<compile_context>
chip_gen: v7x
topology: tpu7x:2x2x1
jax: 0.10.0
libtpu: 0.0.40
codegen_flags: <defaults>
</compile_context>

<pallas_src>
import functools

import jax
import jax.numpy as jnp
from jax import lax
from jax.experimental import pallas as pl
from jax.experimental.pallas import tpu as pltpu


def attn_block_kernel(x_full_ref, x_res_ref, onehot_ref,
                      wq_ref, bq_ref, wkT_ref, bk_ref, wv_ref, bv_ref,
                      wp_ref, bp_ref,
                      o_ref, h_s, kT_s, v_s, *, eps, exp_dtype):
    qi = pl.program_id(1)
    C, HW = h_s.shape
    G = onehot_ref.shape[1]
    tq = o_ref.shape[2]
    inv_n = 1.0 / float((C // G) * HW)   # elements per GroupNorm group

    # ---- per-image work (once per b): GroupNorm stats + k/v projections ----
    @pl.when(qi == 0)
    def _():
        x = x_full_ref[0]                  # (C, HW) f32
        onehot = onehot_ref[...]           # (C, G)  channel -> group one-hot

        # two-pass GroupNorm (mean first, then E[(x-mean)^2]) for numerical safety
        s1 = jnp.sum(x, axis=1, keepdims=True)                        # (C, 1)
        mean_g = jnp.sum(onehot * s1, axis=0, keepdims=True) * inv_n  # (1, G)
        mean_c = jnp.sum(onehot * mean_g, axis=1, keepdims=True)      # (C, 1)
        xc = x - mean_c
        s2 = jnp.sum(xc * xc, axis=1, keepdims=True)                  # (C, 1)
        var_g = jnp.sum(onehot * s2, axis=0, keepdims=True) * inv_n   # (1, G)
        rstd_g = lax.rsqrt(var_g + eps)                               # (1, G)
        rstd_c = jnp.sum(onehot * rstd_g, axis=1, keepdims=True)      # (C, 1)

        # gamma/beta (and 1/sqrt(C) for q) are pre-folded into the conv weights.
        h = (xc * rstd_c).astype(jnp.bfloat16)                        # (C, HW) bf16
        h_s[...] = h

        # k stored pre-transposed: kT[j, o] = sum_c h[c, j] * wkT[c, o]  (= k[o, j])
        kT = lax.dot_general(h, wkT_ref[...], (((0,), (0,)), ((), ())),
                             preferred_element_type=jnp.float32) + bk_ref[...]
        kT_s[...] = kT.astype(jnp.bfloat16)                           # (HW, C)

        v = jnp.dot(wv_ref[...], h,
                    preferred_element_type=jnp.float32) + bv_ref[...]
        v_s[...] = v.astype(jnp.bfloat16)                             # (C, HW)

    # ---- per-query-tile attention ----
    start = pl.multiple_of(qi * tq, tq)
    h_t = h_s[:, pl.ds(start, tq)]                                    # (C, tq) bf16
    # q projected per tile (spreads projection FLOPs across the tile loop);
    # the 1/sqrt(C) scale is folded into wq/bq already.
    q_t = (jnp.dot(wq_ref[...], h_t, preferred_element_type=jnp.float32)
           + bq_ref[...]).astype(jnp.bfloat16)                        # (C, tq)

    # scores[j, i] = sum_c k[c, j] * q[c, i]  -- canonical (HW,C)@(C,tq) matmul
    scores = jnp.dot(kT_s[...], q_t,
                     preferred_element_type=jnp.float32)              # (HW, tq) f32
    m = jnp.max(scores, axis=0, keepdims=True)                        # (1, tq)
    e = jnp.exp((scores - m).astype(exp_dtype))                       # (HW, tq)
    rowsum = jnp.sum(e, axis=0, dtype=jnp.float32, keepdims=True)     # f32 accumulate
    inv = pl.reciprocal(rowsum, approx=True)                          # EUP, ~free

    # deferred softmax: un-normalized exp @ v, then one multiply per (c, query)
    attn_num = jnp.dot(v_s[...], e.astype(jnp.bfloat16),
                       preferred_element_type=jnp.float32)            # (C, tq)
    attn = (attn_num * inv).astype(jnp.bfloat16)                      # (C, tq)

    proj = jnp.dot(wp_ref[...], attn,
                   preferred_element_type=jnp.float32) + bp_ref[...]  # (C, tq)

    o_ref[0] = x_res_ref[0] + proj                                    # residual add


def _tpu_config():
    """Generation-aware tuning knobs (safe fallbacks if queries fail)."""
    kind = ""
    try:
        kind = jax.devices()[0].device_kind.lower()
    except Exception:
        pass
    vmem_cap = None
    try:
        vmem_cap = int(pltpu.get_tpu_info().vmem_capacity_bytes)
    except Exception:
        pass
    if vmem_cap is None:
        vmem_cap = (64 << 20) if "v7" in kind else (128 << 20)
    is_v7x = ("v7" in kind) or (vmem_cap <= (64 << 20))
    wide_mxu = ("v6" in kind) or ("v7" in kind)   # 2x256^2 MXU + bf16 VPU/EUP
    return {"kind": kind, "vmem_cap": vmem_cap, "is_v7x": is_v7x, "wide_mxu": wide_mxu}


def _pick_tq(HW, *, wide_mxu, budget_bytes, e_bytes):
    """Largest lane-aligned query tile dividing HW whose scores+exp transients
    fit the generation-specific VMEM budget.  Floor 256 on wide-MXU chips."""
    if HW % 128 != 0:
        return HW
    tq = 256 if (wide_mxu and HW % 256 == 0) else 128
    per_elem = 4 + e_bytes      # f32 scores + exp tile
    while (HW % (tq * 2) == 0) and (tq * 2) <= 1024 and (tq * 2) * HW * per_elem <= budget_bytes:
        tq *= 2
    return tq


def attn_block(x_nchw, params, *, tq=None):
    """x_nchw: (B, C, H, W) float32. Returns (B, C, H, W)."""
    B, C, H, W = x_nchw.shape
    HW = H * W
    G = 32
    assert C % G == 0, "GroupNorm(32) requires channels divisible by 32"

    cfg = _tpu_config()
    exp_dtype = jnp.bfloat16 if cfg["wide_mxu"] else jnp.float32   # f32 exp on v5e
    e_bytes = 2 if cfg["wide_mxu"] else 4
    budget = (8 << 20) if cfg["is_v7x"] else (20 << 20)

    if tq is None:
        tq = _pick_tq(HW, wide_mxu=cfg["wide_mxu"], budget_bytes=budget, e_bytes=e_bytes)
    assert HW % tq == 0 and (tq % 128 == 0 or tq == HW)
    nq = HW // tq

    # Free reshape only -- no HBM transpose (kernel works in (C, HW) layout).
    x = x_nchw.reshape(B, C, HW).astype(jnp.float32)

    # Fold GroupNorm affine + attention scale into the conv weights.
    gamma = params["gamma"].astype(jnp.float32)
    beta = params["beta"].astype(jnp.float32)
    scale = float(C) ** -0.5

    def fold(w, b, s):
        w = w.astype(jnp.float32)
        b = b.astype(jnp.float32)
        return (w * gamma[None, :]) * s, (w @ beta + b) * s

    wq_f, bq_f = fold(params["wq"], params["bq"], scale)   # 1/sqrt(C) folded into q
    wk_f, bk_f = fold(params["wk"], params["bk"], 1.0)
    wv_f, bv_f = fold(params["wv"], params["bv"], 1.0)

    wq = wq_f.astype(jnp.bfloat16)                     # (C_out, C_in)
    bq = bq_f.reshape(C, 1)
    wkT = wk_f.T.astype(jnp.bfloat16)                  # (C_in, C_out): k produced pre-transposed
    bk = bk_f.reshape(1, C)
    wv = wv_f.astype(jnp.bfloat16)
    bv = bv_f.reshape(C, 1)
    wp = params["wp"].astype(jnp.bfloat16)
    bp = params["bp"].astype(jnp.float32).reshape(C, 1)

    # channel -> group one-hot (C, G) for in-kernel GroupNorm statistics
    onehot = (jnp.arange(C)[:, None] // (C // G) == jnp.arange(G)[None, :]).astype(jnp.float32)

    # VMEM estimate after the transient fix; generation-aware ceiling.
    x_bufs = 1 if cfg["is_v7x"] else 2
    est = (
        x_bufs * C * HW * 4                    # full-x block (GroupNorm input)
        + 4 * C * tq * 4                       # residual-x + out tiles (double buffered)
        + 4 * C * C * 2 + 8 * C * 4 + C * G * 4  # weights / biases / onehot (single buffered)
        + 3 * C * HW * 2                       # h / kT / v bf16 scratch
        + HW * tq * (4 + e_bytes)              # scores + exp transients
        + 2 * C * HW * 4                       # GroupNorm / per-projection f32 transients
        + 4 * C * tq * 4                       # per-tile q / attn / proj transients
    )
    ceiling = min(cfg["vmem_cap"] - (8 << 20), 100 << 20)   # 56 MiB v7x, 100 MiB v5e/v6e
    vmem_limit = min(max(int(est * 1.3) + (4 << 20), 32 << 20), ceiling)

    const_spec = lambda shp: pl.BlockSpec(shp, lambda b, t: (0, 0),
                                          pipeline_mode=pl.Buffered(1))
    x_full_kwargs = {}
    if cfg["is_v7x"]:
        # 64 MiB VMEM: don't double-buffer the full-x block; its per-b DMA
        # (~2-3 us at 3.2 TB/s) is amortized over the nq query tiles.
        x_full_kwargs["pipeline_mode"] = pl.Buffered(1)

    out = pl.pallas_call(
        functools.partial(attn_block_kernel, eps=1e-6, exp_dtype=exp_dtype),
        out_shape=jax.ShapeDtypeStruct((B, C, HW), jnp.float32),
        grid=(B, nq),
        in_specs=[
            pl.BlockSpec((1, C, HW), lambda b, t: (b, 0, 0), **x_full_kwargs),  # x (GroupNorm)
            pl.BlockSpec((1, C, tq), lambda b, t: (b, 0, t)),                   # x (residual tile)
            const_spec((C, G)),          # group one-hot
            const_spec((C, C)),          # wq (bf16, scale folded)
            const_spec((C, 1)),          # bq
            const_spec((C, C)),          # wk^T (bf16)
            const_spec((1, C)),          # bk (row form for kT)
            const_spec((C, C)),          # wv (bf16)
            const_spec((C, 1)),          # bv
            const_spec((C, C)),          # wp (bf16)
            const_spec((C, 1)),          # bp
        ],
        out_specs=pl.BlockSpec((1, C, tq), lambda b, t: (b, 0, t)),
        scratch_shapes=[
            pltpu.VMEM((C, HW), jnp.bfloat16),   # normalized h (q projected per tile)
            pltpu.VMEM((HW, C), jnp.bfloat16),   # k, pre-transposed
            pltpu.VMEM((C, HW), jnp.bfloat16),   # v
        ],
        compiler_params=pltpu.CompilerParams(
            dimension_semantics=("parallel", "arbitrary"),
            vmem_limit_bytes=vmem_limit,
        ),
    )(x, x, onehot, wq, bq, wkT, bk, wv, bv, wp, bp)

    return out.reshape(B, C, H, W)


def attn_block_reference(x, params):
    """Pure-JAX (f32) reference mirroring the PyTorch forward, for correctness."""
    B, C, H, W = x.shape
    G = 32
    xr = x.reshape(B, G, (C // G) * H * W)
    mean = xr.mean(-1, keepdims=True)
    var = xr.var(-1, keepdims=True)
    h = ((xr - mean) / jnp.sqrt(var + 1e-6)).reshape(B, C, H, W)
    h = h * params["gamma"][None, :, None, None] + params["beta"][None, :, None, None]

    def conv1x1(t, w, b):
        return jnp.einsum("bchw,oc->bohw", t, w) + b[None, :, None, None]

    q = conv1x1(h, params["wq"], params["bq"])
    k = conv1x1(h, params["wk"], params["bk"])
    v = conv1x1(h, params["wv"], params["bv"])
    q = q.reshape(B, C, H * W).transpose(0, 2, 1)
    k = k.reshape(B, C, H * W)
    w_ = jnp.einsum("bic,bcj->bij", q, k) * (C ** -0.5)
    w_ = jax.nn.softmax(w_, axis=2)
    v = v.reshape(B, C, H * W)
    h_ = jnp.einsum("bcj,bij->bci", v, w_).reshape(B, C, H, W)
    h_ = conv1x1(h_, params["wp"], params["bp"])
    return x + h_


def make_params(key, C):
    ks = jax.random.split(key, 10)
    return {
        "gamma": 1.0 + 0.1 * jax.random.normal(ks[0], (C,), jnp.float32),
        "beta": 0.1 * jax.random.normal(ks[1], (C,), jnp.float32),
        "wq": 0.05 * jax.random.normal(ks[2], (C, C), jnp.float32),
        "bq": 0.01 * jax.random.normal(ks[3], (C,), jnp.float32),
        "wk": 0.05 * jax.random.normal(ks[4], (C, C), jnp.float32),
        "bk": 0.01 * jax.random.normal(ks[5], (C,), jnp.float32),
        "wv": 0.05 * jax.random.normal(ks[6], (C, C), jnp.float32),
        "bv": 0.01 * jax.random.normal(ks[7], (C,), jnp.float32),
        "wp": 0.05 * jax.random.normal(ks[8], (C, C), jnp.float32),
        "bp": 0.01 * jax.random.normal(ks[9], (C,), jnp.float32),
    }


if __name__ == "__main__":
    B, C, H, W = 2, 64, 16, 16   # GroupNorm(32) => C must be a multiple of 32; HW = 256
    key = jax.random.PRNGKey(0)
    kx, kp = jax.random.split(key)
    x = jax.random.normal(kx, (B, C, H, W), jnp.float32)
    params = make_params(kp, C)

    ref = attn_block_reference(x, params)

    # multi-tile path (2 query tiles of 128)
    out = jax.block_until_ready(attn_block(x, params, tq=128))
    assert out.shape == (B, C, H, W)
    assert jnp.allclose(out, ref, atol=3e-2, rtol=3e-2), (
        f"tiled mismatch, max abs err {jnp.max(jnp.abs(out - ref))}")

    # default (auto-tuned tile) path
    out2 = jax.block_until_ready(attn_block(x, params))
    assert jnp.allclose(out2, ref, atol=3e-2, rtol=3e-2), (
        f"auto-tile mismatch, max abs err {jnp.max(jnp.abs(out2 - ref))}")

    print("KERNEL_OK")
</pallas_src>

<mosaic_0001>
module attributes {stable_mosaic.version = 11 : i64} {
  func.func @attn_block_kernel(%arg0: i32, %arg1: i32, %arg2: memref<1x64x256xf32, #tpu.memory_space<vmem>>, %arg3: memref<1x64x128xf32, #tpu.memory_space<vmem>>, %arg4: memref<64x32xf32, #tpu.memory_space<vmem>>, %arg5: memref<64x64xbf16, #tpu.memory_space<vmem>>, %arg6: memref<64x1xf32, #tpu.memory_space<vmem>>, %arg7: memref<64x64xbf16, #tpu.memory_space<vmem>>, %arg8: memref<1x64xf32, #tpu.memory_space<vmem>>, %arg9: memref<64x64xbf16, #tpu.memory_space<vmem>>, %arg10: memref<64x1xf32, #tpu.memory_space<vmem>>, %arg11: memref<64x64xbf16, #tpu.memory_space<vmem>>, %arg12: memref<64x1xf32, #tpu.memory_space<vmem>>, %arg13: memref<1x64x128xf32, #tpu.memory_space<vmem>>, %arg14: memref<64x256xbf16, #tpu.memory_space<vmem>>, %arg15: memref<256x64xbf16, #tpu.memory_space<vmem>>, %arg16: memref<64x256xbf16, #tpu.memory_space<vmem>>) attributes {dimension_semantics = [#tpu.dimension_semantics<parallel>, #tpu.dimension_semantics<arbitrary>], iteration_bounds = array<i64: 2, 2>, scalar_prefetch = 0 : i64, scratch_operands = 3 : i64, tpu.core_type = #tpu.core_type<tc>, window_params = [{transform_indices = @transform_0, window_bounds = array<i64: 1, 64, 256>}, {transform_indices = @transform_1, window_bounds = array<i64: 1, 64, 128>}, {pipeline_mode = #tpu.pipeline_mode<synchronous>, transform_indices = @transform_2, window_bounds = array<i64: 64, 32>}, {pipeline_mode = #tpu.pipeline_mode<synchronous>, transform_indices = @transform_3, window_bounds = array<i64: 64, 64>}, {pipeline_mode = #tpu.pipeline_mode<synchronous>, transform_indices = @transform_4, window_bounds = array<i64: 64, 1>}, {pipeline_mode = #tpu.pipeline_mode<synchronous>, transform_indices = @transform_5, window_bounds = array<i64: 64, 64>}, {pipeline_mode = #tpu.pipeline_mode<synchronous>, transform_indices = @transform_6, window_bounds = array<i64: 1, 64>}, {pipeline_mode = #tpu.pipeline_mode<synchronous>, transform_indices = @transform_7, window_bounds = array<i64: 64, 64>}, {pipeline_mode = #tpu.pipeline_mode<synchronous>, transform_indices = @transform_8, window_bounds = array<i64: 64, 1>}, {pipeline_mode = #tpu.pipeline_mode<synchronous>, transform_indices = @transform_9, window_bounds = array<i64: 64, 64>}, {pipeline_mode = #tpu.pipeline_mode<synchronous>, transform_indices = @transform_10, window_bounds = array<i64: 64, 1>}, {transform_indices = @transform_11, window_bounds = array<i64: 1, 64, 128>}]} {
    %c0_i32 = arith.constant 0 : i32
    %0 = arith.cmpi eq, %arg1, %c0_i32 : i32
    %1 = arith.extui %0 : i1 to i32
    %c0_i32_0 = arith.constant 0 : i32
    %2 = arith.cmpi ne, %1, %c0_i32_0 : i32
    scf.if %2 {
      %c0_24 = arith.constant 0 : index
      %c0_25 = arith.constant 0 : index
      %c0_26 = arith.constant 0 : index
      %40 = vector.load %arg2[%c0_24, %c0_25, %c0_26] : memref<1x64x256xf32, #tpu.memory_space<vmem>>, vector<1x64x256xf32>
      %41 = vector.shape_cast %40 : vector<1x64x256xf32> to vector<64x256xf32>
      %c0_27 = arith.constant 0 : index
      %c0_28 = arith.constant 0 : index
      %42 = vector.load %arg4[%c0_27, %c0_28] : memref<64x32xf32, #tpu.memory_space<vmem>>, vector<64x32xf32>
      %cst_29 = arith.constant dense<0.000000e+00> : vector<64xf32>
      %43 = vector.multi_reduction <add>, %41, %cst_29 [1] : vector<64x256xf32> to vector<64xf32>
      %44 = vector.shape_cast %43 : vector<64xf32> to vector<64x1xf32>
      %45 = vector.broadcast %44 : vector<64x1xf32> to vector<64x32xf32>
      %46 = arith.mulf %42, %45 : vector<64x32xf32>
      %cst_30 = arith.constant dense<0.000000e+00> : vector<32xf32>
      %47 = vector.multi_reduction <add>, %46, %cst_30 [0] : vector<64x32xf32> to vector<32xf32>
      %48 = vector.shape_cast %47 : vector<32xf32> to vector<1x32xf32>
      %cst_31 = arith.constant 0.001953125 : f32
      %49 = vector.broadcast %cst_31 : f32 to vector<1x32xf32>
      %50 = arith.mulf %48, %49 : vector<1x32xf32>
      %51 = vector.broadcast %50 : vector<1x32xf32> to vector<64x32xf32>
      %52 = arith.mulf %42, %51 : vector<64x32xf32>
      %cst_32 = arith.constant dense<0.000000e+00> : vector<64xf32>
      %53 = vector.multi_reduction <add>, %52, %cst_32 [1] : vector<64x32xf32> to vector<64xf32>
      %54 = vector.shape_cast %53 : vector<64xf32> to vector<64x1xf32>
      %55 = vector.broadcast %54 : vector<64x1xf32> to vector<64x256xf32>
      %56 = arith.subf %41, %55 : vector<64x256xf32>
      %57 = arith.mulf %56, %56 : vector<64x256xf32>
      %cst_33 = arith.constant dense<0.000000e+00> : vector<64xf32>
      %58 = vector.multi_reduction <add>, %57, %cst_33 [1] : vector<64x256xf32> to vector<64xf32>
      %59 = vector.shape_cast %58 : vector<64xf32> to vector<64x1xf32>
      %60 = vector.broadcast %59 : vector<64x1xf32> to vector<64x32xf32>
      %61 = arith.mulf %42, %60 : vector<64x32xf32>
      %cst_34 = arith.constant dense<0.000000e+00> : vector<32xf32>
      %62 = vector.multi_reduction <add>, %61, %cst_34 [0] : vector<64x32xf32> to vector<32xf32>
      %63 = vector.shape_cast %62 : vector<32xf32> to vector<1x32xf32>
      %cst_35 = arith.constant 0.001953125 : f32
      %64 = vector.broadcast %cst_35 : f32 to vector<1x32xf32>
      %65 = arith.mulf %63, %64 : vector<1x32xf32>
      %cst_36 = arith.constant 9.99999997E-7 : f32
      %66 = vector.broadcast %cst_36 : f32 to vector<1x32xf32>
      %67 = arith.addf %65, %66 : vector<1x32xf32>
      %68 = math.rsqrt %67 : vector<1x32xf32>
      %69 = vector.broadcast %68 : vector<1x32xf32> to vector<64x32xf32>
      %70 = arith.mulf %42, %69 : vector<64x32xf32>
      %cst_37 = arith.constant dense<0.000000e+00> : vector<64xf32>
      %71 = vector.multi_reduction <add>, %70, %cst_37 [1] : vector<64x32xf32> to vector<64xf32>
      %72 = vector.shape_cast %71 : vector<64xf32> to vector<64x1xf32>
      %73 = vector.broadcast %72 : vector<64x1xf32> to vector<64x256xf32>
      %74 = arith.mulf %56, %73 : vector<64x256xf32>
      %75 = arith.truncf %74 : vector<64x256xf32> to vector<64x256xbf16>
      %c0_38 = arith.constant 0 : index
      %c0_39 = arith.constant 0 : index
      %76 = vector.load %arg14[%c0_38, %c0_39] : memref<64x256xbf16, #tpu.memory_space<vmem>>, vector<64x256xbf16>
      tpu.vector_store %arg14[%c0_38, %c0_39], %75 {strides = array<i32>} : memref<64x256xbf16, #tpu.memory_space<vmem>>, vector<64x256xbf16>,
      %c0_40 = arith.constant 0 : index
      %c0_41 = arith.constant 0 : index
      %77 = vector.load %arg7[%c0_40, %c0_41] : memref<64x64xbf16, #tpu.memory_space<vmem>>, vector<64x64xbf16>
      %cst_42 = arith.constant dense<0.000000e+00> : vector<256x64xf32>
      %78 = tpu.matmul %75, %77, %cst_42 {dimension_numbers = #tpu.dot_dimension_numbers<[0], [0], [1], [1], [0, 1, 1, 1], [], []>} : vector<64x256xbf16>, vector<64x64xbf16>, vector<256x64xf32> -> vector<256x64xf32>
      %c0_43 = arith.constant 0 : index
      %c0_44 = arith.constant 0 : index
      %79 = vector.load %arg8[%c0_43, %c0_44] : memref<1x64xf32, #tpu.memory_space<vmem>>, vector<1x64xf32>
      %80 = vector.broadcast %79 : vector<1x64xf32> to vector<256x64xf32>
      %81 = arith.addf %78, %80 : vector<256x64xf32>
      %82 = arith.truncf %81 : vector<256x64xf32> to vector<256x64xbf16>
      %c0_45 = arith.constant 0 : index
      %c0_46 = arith.constant 0 : index
      %83 = vector.load %arg15[%c0_45, %c0_46] : memref<256x64xbf16, #tpu.memory_space<vmem>>, vector<256x64xbf16>
      tpu.vector_store %arg15[%c0_45, %c0_46], %82 {strides = array<i32>} : memref<256x64xbf16, #tpu.memory_space<vmem>>, vector<256x64xbf16>,
      %c0_47 = arith.constant 0 : index
      %c0_48 = arith.constant 0 : index
      %84 = vector.load %arg9[%c0_47, %c0_48] : memref<64x64xbf16, #tpu.memory_space<vmem>>, vector<64x64xbf16>
      %cst_49 = arith.constant dense<0.000000e+00> : vector<64x256xf32>
      %85 = tpu.matmul %84, %75, %cst_49 {dimension_numbers = #tpu.dot_dimension_numbers<[1], [0], [0], [1], [0, 0, 1, 1], [], []>} : vector<64x64xbf16>, vector<64x256xbf16>, vector<64x256xf32> -> vector<64x256xf32>
      %c0_50 = arith.constant 0 : index
      %c0_51 = arith.constant 0 : index
      %86 = vector.load %arg10[%c0_50, %c0_51] : memref<64x1xf32, #tpu.memory_space<vmem>>, vector<64x1xf32>
      %87 = vector.broadcast %86 : vector<64x1xf32> to vector<64x256xf32>
      %88 = arith.addf %85, %87 : vector<64x256xf32>
      %89 = arith.truncf %88 : vector<64x256xf32> to vector<64x256xbf16>
      %c0_52 = arith.constant 0 : index
      %c0_53 = arith.constant 0 : index
      %90 = vector.load %arg16[%c0_52, %c0_53] : memref<64x256xbf16, #tpu.memory_space<vmem>>, vector<64x256xbf16>
      tpu.vector_store %arg16[%c0_52, %c0_53], %89 {strides = array<i32>} : memref<64x256xbf16, #tpu.memory_space<vmem>>, vector<64x256xbf16>,
    } else {
    }
    %c128_i32 = arith.constant 128 : i32
    %3 = arith.muli %arg1, %c128_i32 : i32
    %4 = tpu.assume_multiple %3, 128 : i32
    %c0 = arith.constant 0 : index
    %5 = arith.index_cast %4 : i32 to index
    %6 = vector.load %arg14[%c0, %5] : memref<64x256xbf16, #tpu.memory_space<vmem>>, vector<64x128xbf16>
    %c0_1 = arith.constant 0 : index
    %c0_2 = arith.constant 0 : index
    %7 = vector.load %arg5[%c0_1, %c0_2] : memref<64x64xbf16, #tpu.memory_space<vmem>>, vector<64x64xbf16>
    %cst = arith.constant dense<0.000000e+00> : vector<64x128xf32>
    %8 = tpu.matmul %7, %6, %cst {dimension_numbers = #tpu.dot_dimension_numbers<[1], [0], [0], [1], [0, 0, 1, 1], [], []>} : vector<64x64xbf16>, vector<64x128xbf16>, vector<64x128xf32> -> vector<64x128xf32>
    %c0_3 = arith.constant 0 : index
    %c0_4 = arith.constant 0 : index
    %9 = vector.load %arg6[%c0_3, %c0_4] : memref<64x1xf32, #tpu.memory_space<vmem>>, vector<64x1xf32>
    %10 = vector.broadcast %9 : vector<64x1xf32> to vector<64x128xf32>
    %11 = arith.addf %8, %10 : vector<64x128xf32>
    %12 = arith.truncf %11 : vector<64x128xf32> to vector<64x128xbf16>
    %c0_5 = arith.constant 0 : index
    %c0_6 = arith.constant 0 : index
    %13 = vector.load %arg15[%c0_5, %c0_6] : memref<256x64xbf16, #tpu.memory_space<vmem>>, vector<256x64xbf16>
    %cst_7 = arith.constant dense<0.000000e+00> : vector<256x128xf32>
    %14 = tpu.matmul %13, %12, %cst_7 {dimension_numbers = #tpu.dot_dimension_numbers<[1], [0], [0], [1], [0, 0, 1, 1], [], []>} : vector<256x64xbf16>, vector<64x128xbf16>, vector<256x128xf32> -> vector<256x128xf32>
    %cst_8 = arith.constant dense<0xFF800000> : vector<128xf32>
    %15 = vector.multi_reduction <maximumf>, %14, %cst_8 [0] : vector<256x128xf32> to vector<128xf32>
    %16 = vector.shape_cast %15 : vector<128xf32> to vector<1x128xf32>
    %17 = vector.broadcast %16 : vector<1x128xf32> to vector<256x128xf32>
    %18 = arith.subf %14, %17 : vector<256x128xf32>
    %19 = math.exp %18 : vector<256x128xf32>
    %cst_9 = arith.constant dense<0.000000e+00> : vector<128xf32>
    %20 = vector.multi_reduction <add>, %19, %cst_9 [0] : vector<256x128xf32> to vector<128xf32>
    %21 = vector.shape_cast %20 : vector<128xf32> to vector<1x128xf32>
    %22 = tpu.reciprocal %21 {approx = true} : vector<1x128xf32> -> vector<1x128xf32>
    %c0_10 = arith.constant 0 : index
    %c0_11 = arith.constant 0 : index
    %23 = vector.load %arg16[%c0_10, %c0_11] : memref<64x256xbf16, #tpu.memory_space<vmem>>, vector<64x256xbf16>
    %24 = arith.truncf %19 : vector<256x128xf32> to vector<256x128xbf16>
    %cst_12 = arith.constant dense<0.000000e+00> : vector<64x128xf32>
    %25 = tpu.matmul %23, %24, %cst_12 {dimension_numbers = #tpu.dot_dimension_numbers<[1], [0], [0], [1], [0, 0, 1, 1], [], []>} : vector<64x256xbf16>, vector<256x128xbf16>, vector<64x128xf32> -> vector<64x128xf32>
    %26 = vector.broadcast %22 : vector<1x128xf32> to vector<64x128xf32>
    %27 = arith.mulf %25, %26 : vector<64x128xf32>
    %28 = arith.truncf %27 : vector<64x128xf32> to vector<64x128xbf16>
    %c0_13 = arith.constant 0 : index
    %c0_14 = arith.constant 0 : index
    %29 = vector.load %arg11[%c0_13, %c0_14] : memref<64x64xbf16, #tpu.memory_space<vmem>>, vector<64x64xbf16>
    %cst_15 = arith.constant dense<0.000000e+00> : vector<64x128xf32>
    %30 = tpu.matmul %29, %28, %cst_15 {dimension_numbers = #tpu.dot_dimension_numbers<[1], [0], [0], [1], [0, 0, 1, 1], [], []>} : vector<64x64xbf16>, vector<64x128xbf16>, vector<64x128xf32> -> vector<64x128xf32>
    %c0_16 = arith.constant 0 : index
    %c0_17 = arith.constant 0 : index
    %31 = vector.load %arg12[%c0_16, %c0_17] : memref<64x1xf32, #tpu.memory_space<vmem>>, vector<64x1xf32>
    %32 = vector.broadcast %31 : vector<64x1xf32> to vector<64x128xf32>
    %33 = arith.addf %30, %32 : vector<64x128xf32>
    %c0_18 = arith.constant 0 : index
    %c0_19 = arith.constant 0 : index
    %c0_20 = arith.constant 0 : index
    %34 = vector.load %arg3[%c0_18, %c0_19, %c0_20] : memref<1x64x128xf32, #tpu.memory_space<vmem>>, vector<1x64x128xf32>
    %35 = vector.shape_cast %34 : vector<1x64x128xf32> to vector<64x128xf32>
    %36 = arith.addf %35, %33 : vector<64x128xf32>
    %c0_21 = arith.constant 0 : index
    %c0_22 = arith.constant 0 : index
    %c0_23 = arith.constant 0 : index
    %37 = vector.load %arg13[%c0_21, %c0_22, %c0_23] : memref<1x64x128xf32, #tpu.memory_space<vmem>>, vector<1x64x128xf32>
    %38 = vector.shape_cast %37 : vector<1x64x128xf32> to vector<64x128xf32>
    %39 = vector.shape_cast %36 : vector<64x128xf32> to vector<1x64x128xf32>
    tpu.vector_store %arg13[%c0_21, %c0_22, %c0_23], %39 {strides = array<i32>} : memref<1x64x128xf32, #tpu.memory_space<vmem>>, vector<1x64x128xf32>,
    return
  }
  func.func @transform_0(%arg0: i32, %arg1: i32) -> (i32, i32, i32) {
    %c0_i32 = arith.constant 0 : i32
    %c0_i32_0 = arith.constant 0 : i32
    %c0_i32_1 = arith.constant 0 : i32
    return %arg0, %c0_i32, %c0_i32_0 : i32, i32, i32
  }
  func.func @transform_1(%arg0: i32, %arg1: i32) -> (i32, i32, i32) {
    %c0_i32 = arith.constant 0 : i32
    %c0_i32_0 = arith.constant 0 : i32
    return %arg0, %c0_i32, %arg1 : i32, i32, i32
  }
  func.func @transform_2(%arg0: i32, %arg1: i32) -> (i32, i32) {
    %c0_i32 = arith.constant 0 : i32
    %c0_i32_0 = arith.constant 0 : i32
    %c0_i32_1 = arith.constant 0 : i32
    return %c0_i32, %c0_i32_0 : i32, i32
  }
  func.func @transform_3(%arg0: i32, %arg1: i32) -> (i32, i32) {
    %c0_i32 = arith.constant 0 : i32
    %c0_i32_0 = arith.constant 0 : i32
    %c0_i32_1 = arith.constant 0 : i32
    return %c0_i32, %c0_i32_0 : i32, i32
  }
  func.func @transform_4(%arg0: i32, %arg1: i32) -> (i32, i32) {
    %c0_i32 = arith.constant 0 : i32
    %c0_i32_0 = arith.constant 0 : i32
    %c0_i32_1 = arith.constant 0 : i32
    return %c0_i32, %c0_i32_0 : i32, i32
  }
  func.func @transform_5(%arg0: i32, %arg1: i32) -> (i32, i32) {
    %c0_i32 = arith.constant 0 : i32
    %c0_i32_0 = arith.constant 0 : i32
    %c0_i32_1 = arith.constant 0 : i32
    return %c0_i32, %c0_i32_0 : i32, i32
  }
  func.func @transform_6(%arg0: i32, %arg1: i32) -> (i32, i32) {
    %c0_i32 = arith.constant 0 : i32
    %c0_i32_0 = arith.constant 0 : i32
    %c0_i32_1 = arith.constant 0 : i32
    return %c0_i32, %c0_i32_0 : i32, i32
  }
  func.func @transform_7(%arg0: i32, %arg1: i32) -> (i32, i32) {
    %c0_i32 = arith.constant 0 : i32
    %c0_i32_0 = arith.constant 0 : i32
    %c0_i32_1 = arith.constant 0 : i32
    return %c0_i32, %c0_i32_0 : i32, i32
  }
  func.func @transform_8(%arg0: i32, %arg1: i32) -> (i32, i32) {
    %c0_i32 = arith.constant 0 : i32
    %c0_i32_0 = arith.constant 0 : i32
    %c0_i32_1 = arith.constant 0 : i32
    return %c0_i32, %c0_i32_0 : i32, i32
  }
  func.func @transform_9(%arg0: i32, %arg1: i32) -> (i32, i32) {
    %c0_i32 = arith.constant 0 : i32
    %c0_i32_0 = arith.constant 0 : i32
    %c0_i32_1 = arith.constant 0 : i32
    return %c0_i32, %c0_i32_0 : i32, i32
  }
  func.func @transform_10(%arg0: i32, %arg1: i32) -> (i32, i32) {
    %c0_i32 = arith.constant 0 : i32
    %c0_i32_0 = arith.constant 0 : i32
    %c0_i32_1 = arith.constant 0 : i32
    return %c0_i32, %c0_i32_0 : i32, i32
  }
  func.func @transform_11(%arg0: i32, %arg1: i32) -> (i32, i32, i32) {
    %c0_i32 = arith.constant 0 : i32
    %c0_i32_0 = arith.constant 0 : i32
    return %arg0, %c0_i32, %arg1 : i32, i32, i32
  }
}

</mosaic_0001>

<llo_original>
// kernel: tpu_custom_call.1
$region0: #{tpu_custom_call.1}
  #allocation0 [shape = 'u32[]', space=smem, size = 0x4, offset = 0x4, fixed_abs, tag = 'smem constant byte address 0x4 - core index']
  #allocation1 [shape = 'u32[144,128]{1,0:T(1,128)}', space=vmem, size = 0x12000, scoped, tag = 'internal scratch']
  #allocation2 [shape = 'bf16[64,256]{1,0:T(16,128)(2,1)}', space=vmem, size = 0x8000, scoped, tag = 'scratch operand']
  #allocation3 [shape = 'bf16[256,64]{1,0:T(16,128)(2,1)}', space=vmem, size = 0x10000, scoped, tag = 'scratch operand']
  #allocation4 [shape = 'bf16[64,256]{1,0:T(16,128)(2,1)}', space=vmem, size = 0x8000, scoped, tag = 'scratch operand']
  %s0 = inlined_call_operand.vmem [shape: f32[2,64,256], index: 0, kind: input, shape index: {}]
  %s1 = inlined_call_operand.hbm [shape: f32[2,64,256], index: 1, kind: input, shape index: {}]
  %s2 = inlined_call_operand.vmem [shape: f32[64,32], index: 2, kind: input, shape index: {}]
  %s3 = inlined_call_operand.vmem [shape: bf16[64,64], index: 3, kind: input, shape index: {}]
  %s4 = inlined_call_operand.vmem [shape: f32[64,1], index: 4, kind: input, shape index: {}]
  %s5 = inlined_call_operand.hbm [shape: bf16[64,64], index: 5, kind: input, shape index: {}]
  %s6 = inlined_call_operand.hbm [shape: f32[1,64], index: 6, kind: input, shape index: {}]
  %s7 = inlined_call_operand.hbm [shape: bf16[64,64], index: 7, kind: input, shape index: {}]
  %s8 = inlined_call_operand.vmem [shape: f32[64,1], index: 8, kind: input, shape index: {}]
  %s9 = inlined_call_operand.vmem [shape: bf16[64,64], index: 9, kind: input, shape index: {}]
  %s10 = inlined_call_operand.vmem [shape: f32[64,1], index: 10, kind: input, shape index: {}]
  %s11 = inlined_call_operand.hbm [shape: f32[2,64,256], index: 11, kind: output, shape index: {}]
  %s12 = sld [smem:[#allocation0]]
  $region97: #{tpu_custom_call.1} parent=0
    _
  %s14 = ssub.s32 1, %s12
  %s15 = scalar_select 0, %s14, %s12
  $region1: #{tpu_custom_call.1} parent=0
    #allocation5 [shape = 'u8[65536]{0}', space=vmem, size = 0x10000, scoped, tag = 'input window, operand 1']
    #allocation6 [shape = 's32[2]{0}', space=sflag, size = 0x8, scoped, tag = 'scoped memory for tpu_custom_call.1']
    #allocation7 [shape = 's32[2]{0}', space=sflag, size = 0x8, scoped, tag = 'scoped memory for tpu_custom_call.1']
    #allocation8 [shape = 'u8[16384]{0}', space=vmem, size = 0x4000, scoped, tag = 'input window, operand 5, single buffered']
    #allocation9 [shape = 's32[1]{0}', space=sflag, size = 0x4, scoped, tag = 'scoped memory for tpu_custom_call.1']
    #allocation10 [shape = 'u8[512]{0}', space=vmem, size = 0x400, scoped, tag = 'input window, operand 6, single buffered']
    #allocation11 [shape = 'u8[16384]{0}', space=vmem, size = 0x4000, scoped, tag = 'input window, operand 7, single buffered']
    #allocation12 [shape = 's32[1]{0}', space=sflag, size = 0x4, scoped, tag = 'scoped memory for tpu_custom_call.1']
    #allocation13 [shape = 'u8[65536]{0}', space=vmem, size = 0x10000, scoped, tag = 'output window, operand 0']
    %16 = vsyncpa [#allocation6], 0
    %s17 = scalar_lea.sflag [#allocation6], 1
    %18 = vsyncpa %s17, 0
    %19 = vsyncpa [#allocation9], 0
    %20 = vsyncpa [#allocation12], 0
    %21 = vsyncpa [#allocation7], 0
    %s22 = scalar_lea.sflag [#allocation7], 1
    %23 = vsyncpa %s22, 0
    loop: start=0, step=1, limit=6
    $region2: #{tpu_custom_call.1} parent=1 // loop_pre_header
      _
    $region3: #{tpu_custom_call.1} parent=1 // loop_header
      %s25 = sphi 0, %s29
      %p26 = scmp.ge.s32.totalorder %s25, 6
      %s32 = sphi 0, %s44
      %s33 = sphi 0, %s40
      %s34 = sphi 0, %s32
      %s35 = sphi 0, %s33
      %s36 = sphi 0, %s34
      %s37 = sphi 0, %s35
      %s47 = sphi 0, %s49
      %s50 = sphi 0, %s47
      %s51 = sphi 0, %s50
      %s67 = sphi 0, %s51
      %s75 = sphi 0, %s77
      %s78 = sphi 0, %s75
      %s79 = sphi 0, %s78
      %s95 = sphi 0, %s79
      %s99 = sphi 0, %s99
      %s101 = sphi 0, %s99
      %s102 = sphi 0, %s101
      %s116 = sphi 0, %s102
      %s120 = sphi 0, %s120
      %s122 = sphi 0, %s120
      %s123 = sphi 0, %s122
      %s137 = sphi 0, %s123
      %s141 = sphi 0, %s141
      %s143 = sphi 0, %s141
      %s144 = sphi 0, %s143
      %s158 = sphi 0, %s144
      %s162 = sphi 0, %s162
      %s164 = sphi 0, %s162
      %s165 = sphi 0, %s164
      %s179 = sphi 0, %s165
      %s183 = sphi 0, %s183
      %s185 = sphi 0, %s183
      %s186 = sphi 0, %s185
      %s200 = sphi 0, %s186
      %s204 = sphi 0, %s204
      %s206 = sphi 0, %s204
      %s207 = sphi 0, %s206
      %s221 = sphi 0, %s207
      %s225 = sphi 0, %s225
      %s227 = sphi 0, %s225
      %s228 = sphi 0, %s227
      %s242 = sphi 0, %s228
      %s246 = sphi 0, %s246
      %s248 = sphi 0, %s246
      %s249 = sphi 0, %s248
      %s263 = sphi 0, %s249
      %s267 = sphi 0, %s267
      %s269 = sphi 0, %s267
      %s270 = sphi 0, %s269
      %s284 = sphi 0, %s270
      %s292 = sphi 0, %s294
      %s295 = sphi 0, %s292
      %s296 = sphi 0, %s295
      %s312 = sphi 0, %s296
    $region4: #{tpu_custom_call.1} parent=1 // loop_header_branch
      %28 = sbr.rel (%p26) target = $region8
    $region5: #{tpu_custom_call.1} parent=1 // loop_body
      %s30 = ssub.s32 %s25, 1
      %s31 = ssub.s32 %s25, 2
      %s38 = sadd.s32 1, %s33
      %p39 = scmp.ge.s32.totalorder %s38, 2
      %s40 = scalar_select %p39, 0, %s38
      %s41 = sadd.s32 1, %s32
      %s42 = scalar_select %p39, %s41, %s32
      %p43 = scmp.ge.s32.totalorder %s42, 2
      %s44 = scalar_select %p43, 0, %s42
      %s45 = ssub.s32 %s32, %s44
      %p46 = scmp.eq.s32.totalorder %s45, 0
      %s48 = sadd.s32 %s47, 1
      %s49 = scalar_select %p46, %s47, %s48
      %p52 = pneg %p46
      %p53 = scmp.eq.s32.totalorder %s25, 3
      %p54 = por %p52, %p53
      %p55 = scmp.ne.s32.totalorder %s47, %s50
      %p56 = scmp.eq.s32.totalorder %s25, 0
      %p57 = por %p55, %p56
      %p58 = scmp.ne.s32.totalorder %s47, %s50
      %p59 = scmp.eq.s32.totalorder %s30, 3
      %p60 = por %p58, %p59
      %p61 = scmp.ne.s32.totalorder %s50, %s51
      %p62 = scmp.eq.s32.totalorder %s30, 0
      %p63 = por %p61, %p62
      %p64 = scmp.ne.s32.totalorder %s50, %s51
      %p65 = scmp.eq.s32.totalorder %s31, 3
      %p66 = por %p64, %p65
      %p68 = scmp.ne.s32.totalorder %s51, %s67
      %p69 = scmp.eq.s32.totalorder %s31, 0
      %p70 = por %p68, %p69
      %s71 = ssub.s32 %s32, %s44
      %s72 = ssub.s32 %s33, %s40
      %s73 = sor.u32 %s71, %s72
      %p74 = scmp.eq.s32.totalorder %s73, 0
      %s76 = sadd.s32 %s75, 1
      %s77 = scalar_select %p74, %s75, %s76
      %p80 = pneg %p74
      %p81 = scmp.eq.s32.totalorder %s25, 3
      %p82 = por %p80, %p81
      %p83 = scmp.ne.s32.totalorder %s75, %s78
      %p84 = scmp.eq.s32.totalorder %s25, 0
      %p85 = por %p83, %p84
      %p86 = scmp.ne.s32.totalorder %s75, %s78
      %p87 = scmp.eq.s32.totalorder %s30, 3
      %p88 = por %p86, %p87
      %p89 = scmp.ne.s32.totalorder %s78, %s79
      %p90 = scmp.eq.s32.totalorder %s30, 0
      %p91 = por %p89, %p90
      %p92 = scmp.ne.s32.totalorder %s78, %s79
      %p93 = scmp.eq.s32.totalorder %s31, 3
      %p94 = por %p92, %p93
      %p96 = scmp.ne.s32.totalorder %s79, %s95
      %p97 = scmp.eq.s32.totalorder %s31, 0
      %p98 = por %p96, %p97
      %s100 = sadd.s32 %s99, 1
      %p103 = scmp.eq.s32.totalorder %s25, 3
      %p104 = scmp.ne.s32.totalorder %s99, %s101
      %p105 = scmp.eq.s32.totalorder %s25, 0
      %p106 = por %p104, %p105
      %p107 = scmp.ne.s32.totalorder %s99, %s101
      %p108 = scmp.eq.s32.totalorder %s30, 3
      %p109 = por %p107, %p108
      %p110 = scmp.ne.s32.totalorder %s101, %s102
      %p111 = scmp.eq.s32.totalorder %s30, 0
      %p112 = por %p110, %p111
      %p113 = scmp.ne.s32.totalorder %s101, %s102
      %p114 = scmp.eq.s32.totalorder %s31, 3
      %p115 = por %p113, %p114
      %p117 = scmp.ne.s32.totalorder %s102, %s116
      %p118 = scmp.eq.s32.totalorder %s31, 0
      %p119 = por %p117, %p118
      %s121 = sadd.s32 %s120, 1
      %p124 = scmp.eq.s32.totalorder %s25, 3
      %p125 = scmp.ne.s32.totalorder %s120, %s122
      %p126 = scmp.eq.s32.totalorder %s25, 0
      %p127 = por %p125, %p126
      %p128 = scmp.ne.s32.totalorder %s120, %s122
      %p129 = scmp.eq.s32.totalorder %s30, 3
      %p130 = por %p128, %p129
      %p131 = scmp.ne.s32.totalorder %s122, %s123
      %p132 = scmp.eq.s32.totalorder %s30, 0
      %p133 = por %p131, %p132
      %p134 = scmp.ne.s32.totalorder %s122, %s123
      %p135 = scmp.eq.s32.totalorder %s31, 3
      %p136 = por %p134, %p135
      %p138 = scmp.ne.s32.totalorder %s123, %s137
      %p139 = scmp.eq.s32.totalorder %s31, 0
      %p140 = por %p138, %p139
      %s142 = sadd.s32 %s141, 1
      %p145 = scmp.eq.s32.totalorder %s25, 3
      %p146 = scmp.ne.s32.totalorder %s141, %s143
      %p147 = scmp.eq.s32.totalorder %s25, 0
      %p148 = por %p146, %p147
      %p149 = scmp.ne.s32.totalorder %s141, %s143
      %p150 = scmp.eq.s32.totalorder %s30, 3
      %p151 = por %p149, %p150
      %p152 = scmp.ne.s32.totalorder %s143, %s144
      %p153 = scmp.eq.s32.totalorder %s30, 0
      %p154 = por %p152, %p153
      %p155 = scmp.ne.s32.totalorder %s143, %s144
      %p156 = scmp.eq.s32.totalorder %s31, 3
      %p157 = por %p155, %p156
      %p159 = scmp.ne.s32.totalorder %s144, %s158
      %p160 = scmp.eq.s32.totalorder %s31, 0
      %p161 = por %p159, %p160
      %s163 = sadd.s32 %s162, 1
      %p166 = scmp.eq.s32.totalorder %s25, 3
      %p167 = scmp.ne.s32.totalorder %s162, %s164
      %p168 = scmp.eq.s32.totalorder %s25, 0
      %p169 = por %p167, %p168
      %p170 = scmp.ne.s32.totalorder %s162, %s164
      %p171 = scmp.eq.s32.totalorder %s30, 3
      %p172 = por %p170, %p171
      %p173 = scmp.ne.s32.totalorder %s164, %s165
      %p174 = scmp.eq.s32.totalorder %s30, 0
      %p175 = por %p173, %p174
      %p176 = scmp.ne.s32.totalorder %s164, %s165
      %p177 = scmp.eq.s32.totalorder %s31, 3
      %p178 = por %p176, %p177
      %p180 = scmp.ne.s32.totalorder %s165, %s179
      %p181 = scmp.eq.s32.totalorder %s31, 0
      %p182 = por %p180, %p181
      %s184 = sadd.s32 %s183, 1
      %p187 = scmp.eq.s32.totalorder %s25, 3
      %p188 = scmp.ne.s32.totalorder %s183, %s185
      %p189 = scmp.eq.s32.totalorder %s25, 0
      %p190 = por %p188, %p189
      %p191 = scmp.ne.s32.totalorder %s183, %s185
      %p192 = scmp.eq.s32.totalorder %s30, 3
      %p193 = por %p191, %p192
      %p194 = scmp.ne.s32.totalorder %s185, %s186
      %p195 = scmp.eq.s32.totalorder %s30, 0
      %p196 = por %p194, %p195
      %p197 = scmp.ne.s32.totalorder %s185, %s186
      %p198 = scmp.eq.s32.totalorder %s31, 3
      %p199 = por %p197, %p198
      %p201 = scmp.ne.s32.totalorder %s186, %s200
      %p202 = scmp.eq.s32.totalorder %s31, 0
      %p203 = por %p201, %p202
      %s205 = sadd.s32 %s204, 1
      %p208 = scmp.eq.s32.totalorder %s25, 3
      %p209 = scmp.ne.s32.totalorder %s204, %s206
      %p210 = scmp.eq.s32.totalorder %s25, 0
      %p211 = por %p209, %p210
      %p212 = scmp.ne.s32.totalorder %s204, %s206
      %p213 = scmp.eq.s32.totalorder %s30, 3
      %p214 = por %p212, %p213
      %p215 = scmp.ne.s32.totalorder %s206, %s207
      %p216 = scmp.eq.s32.totalorder %s30, 0
      %p217 = por %p215, %p216
      %p218 = scmp.ne.s32.totalorder %s206, %s207
      %p219 = scmp.eq.s32.totalorder %s31, 3
      %p220 = por %p218, %p219
      %p222 = scmp.ne.s32.totalorder %s207, %s221
      %p223 = scmp.eq.s32.totalorder %s31, 0
      %p224 = por %p222, %p223
      %s226 = sadd.s32 %s225, 1
      %p229 = scmp.eq.s32.totalorder %s25, 3
      %p230 = scmp.ne.s32.totalorder %s225, %s227
      %p231 = scmp.eq.s32.totalorder %s25, 0
      %p232 = por %p230, %p231
      %p233 = scmp.ne.s32.totalorder %s225, %s227
      %p234 = scmp.eq.s32.totalorder %s30, 3
      %p235 = por %p233, %p234
      %p236 = scmp.ne.s32.totalorder %s227, %s228
      %p237 = scmp.eq.s32.totalorder %s30, 0
      %p238 = por %p236, %p237
      %p239 = scmp.ne.s32.totalorder %s227, %s228
      %p240 = scmp.eq.s32.totalorder %s31, 3
      %p241 = por %p239, %p240
      %p243 = scmp.ne.s32.totalorder %s228, %s242
      %p244 = scmp.eq.s32.totalorder %s31, 0
      %p245 = por %p243, %p244
      %s247 = sadd.s32 %s246, 1
      %p250 = scmp.eq.s32.totalorder %s25, 3
      %p251 = scmp.ne.s32.totalorder %s246, %s248
      %p252 = scmp.eq.s32.totalorder %s25, 0
      %p253 = por %p251, %p252
      %p254 = scmp.ne.s32.totalorder %s246, %s248
      %p255 = scmp.eq.s32.totalorder %s30, 3
      %p256 = por %p254, %p255
      %p257 = scmp.ne.s32.totalorder %s248, %s249
      %p258 = scmp.eq.s32.totalorder %s30, 0
      %p259 = por %p257, %p258
      %p260 = scmp.ne.s32.totalorder %s248, %s249
      %p261 = scmp.eq.s32.totalorder %s31, 3
      %p262 = por %p260, %p261
      %p264 = scmp.ne.s32.totalorder %s249, %s263
      %p265 = scmp.eq.s32.totalorder %s31, 0
      %p266 = por %p264, %p265
      %s268 = sadd.s32 %s267, 1
      %p271 = scmp.eq.s32.totalorder %s25, 3
      %p272 = scmp.ne.s32.totalorder %s267, %s269
      %p273 = scmp.eq.s32.totalorder %s25, 0
      %p274 = por %p272, %p273
      %p275 = scmp.ne.s32.totalorder %s267, %s269
      %p276 = scmp.eq.s32.totalorder %s30, 3
      %p277 = por %p275, %p276
      %p278 = scmp.ne.s32.totalorder %s269, %s270
      %p279 = scmp.eq.s32.totalorder %s30, 0
      %p280 = por %p278, %p279
      %p281 = scmp.ne.s32.totalorder %s269, %s270
      %p282 = scmp.eq.s32.totalorder %s31, 3
      %p283 = por %p281, %p282
      %p285 = scmp.ne.s32.totalorder %s270, %s284
      %p286 = scmp.eq.s32.totalorder %s31, 0
      %p287 = por %p285, %p286
      %s288 = ssub.s32 %s32, %s44
      %s289 = ssub.s32 %s33, %s40
      %s290 = sor.u32 %s288, %s289
      %p291 = scmp.eq.s32.totalorder %s290, 0
      %s293 = sadd.s32 %s292, 1
      %s294 = scalar_select %p291, %s292, %s293
      %p297 = pneg %p291
      %p298 = scmp.eq.s32.totalorder %s25, 3
      %p299 = por %p297, %p298
      %p300 = scmp.ne.s32.totalorder %s292, %s295
      %p301 = scmp.eq.s32.totalorder %s25, 0
      %p302 = por %p300, %p301
      %p303 = scmp.ne.s32.totalorder %s292, %s295
      %p304 = scmp.eq.s32.totalorder %s30, 3
      %p305 = por %p303, %p304
      %p306 = scmp.ne.s32.totalorder %s295, %s296
      %p307 = scmp.eq.s32.totalorder %s30, 0
      %p308 = por %p306, %p307
      %p309 = scmp.ne.s32.totalorder %s295, %s296
      %p310 = scmp.eq.s32.totalorder %s31, 3
      %p311 = por %p309, %p310
      %p313 = scmp.ne.s32.totalorder %s296, %s312
      %p314 = scmp.eq.s32.totalorder %s31, 0
      %p315 = por %p313, %p314
      %p316 = scmp.le.s32.totalorder 1, %s25
      %p317 = scmp.lt.s32.totalorder %s25, 5
      %p318 = pnand %p316, %p317
      %p319 = pneg %p318
      // Predicated region
      $region9: #{tpu_custom_call.1} parent=5 // pred_check
        _
      $region10: #{tpu_custom_call.1} parent=5 // pred_check_branch
        %321 = sbr.rel (%p318) target = $region12
      $region11: #{tpu_custom_call.1} parent=5 // pred_region
        %s322 = ssub.s32 %s25, 1
        // Predicated region
        $region13: #{tpu_custom_call.1} parent=11 // pred_check
          %p323 = pneg %p112
        $region14: #{tpu_custom_call.1} parent=11 // pred_check_branch
          %325 = sbr.rel (%p323) target = $region16
        $region15: #{tpu_custom_call.1} parent=11 // pred_region
          _
        $region16: #{tpu_custom_call.1} parent=11 // pred_fallthru
          _
        // Predicated region
        $region17: #{tpu_custom_call.1} parent=11 // pred_check
          %p326 = pneg %p133
        $region18: #{tpu_custom_call.1} parent=11 // pred_check_branch
          %328 = sbr.rel (%p326) target = $region20
        $region19: #{tpu_custom_call.1} parent=11 // pred_region
          _
        $region20: #{tpu_custom_call.1} parent=11 // pred_fallthru
          _
        // Predicated region
        $region21: #{tpu_custom_call.1} parent=11 // pred_check
          %p329 = pneg %p154
        $region22: #{tpu_custom_call.1} parent=11 // pred_check_branch
          %331 = sbr.rel (%p329) target = $region24
        $region23: #{tpu_custom_call.1} parent=11 // pred_region
          _
        $region24: #{tpu_custom_call.1} parent=11 // pred_fallthru
          _
        // Predicated region
        $region25: #{tpu_custom_call.1} parent=11 // pred_check
          %p332 = pneg %p175
        $region26: #{tpu_custom_call.1} parent=11 // pred_check_branch
          %334 = sbr.rel (%p332) target = $region28
        $region27: #{tpu_custom_call.1} parent=11 // pred_region
          %s336 = ssub.s32 512, 512
          %337 = vsyncadd [#allocation9], %s336
          %s338 = sshll.u32 [#allocation8], 4
          %s339 = int_to_ptr.vmem [resolvable:$true] %s338
          %344 = dma.hbm_to_vmem [thread:$0]  %s5, 512, %s339, [#allocation9], 64, 64, 4
        $region28: #{tpu_custom_call.1} parent=11 // pred_fallthru
          _
        // Predicated region
        $region29: #{tpu_custom_call.1} parent=11 // pred_check
          %p345 = pneg %p196
        $region30: #{tpu_custom_call.1} parent=11 // pred_check_branch
          %347 = sbr.rel (%p345) target = $region32
        $region31: #{tpu_custom_call.1} parent=11 // pred_region
          %s349 = ssub.s32 16, 16
          %350 = vsyncadd [#allocation9], %s349
          %s352 = sshll.u32 [#allocation10], 4
          %s353 = int_to_ptr.vmem [resolvable:$true] %s352
          %355 = dma.hbm_to_vmem [thread:$0]  %s6, 16, %s353, [#allocation9]
        $region32: #{tpu_custom_call.1} parent=11 // pred_fallthru
          _
        // Predicated region
        $region33: #{tpu_custom_call.1} parent=11 // pred_check
          %p356 = pneg %p217
        $region34: #{tpu_custom_call.1} parent=11 // pred_check_branch
          %358 = sbr.rel (%p356) target = $region36
        $region35: #{tpu_custom_call.1} parent=11 // pred_region
          %s360 = ssub.s32 512, 512
          %361 = vsyncadd [#allocation12], %s360
          %s362 = sshll.u32 [#allocation11], 4
          %s363 = int_to_ptr.vmem [resolvable:$true] %s362
          %368 = dma.hbm_to_vmem [thread:$0]  %s7, 512, %s363, [#allocation12], 64, 64, 4
        $region36: #{tpu_custom_call.1} parent=11 // pred_fallthru
          _
        // Predicated region
        $region37: #{tpu_custom_call.1} parent=11 // pred_check
          %p369 = pneg %p238
        $region38: #{tpu_custom_call.1} parent=11 // pred_check_branch
          %371 = sbr.rel (%p369) target = $region40
        $region39: #{tpu_custom_call.1} parent=11 // pred_region
          _
        $region40: #{tpu_custom_call.1} parent=11 // pred_fallthru
          _
        // Predicated region
        $region41: #{tpu_custom_call.1} parent=11 // pred_check
          %p372 = pneg %p259
        $region42: #{tpu_custom_call.1} parent=11 // pred_check_branch
          %374 = sbr.rel (%p372) target = $region44
        $region43: #{tpu_custom_call.1} parent=11 // pred_region
          _
        $region44: #{tpu_custom_call.1} parent=11 // pred_fallthru
          _
        // Predicated region
        $region45: #{tpu_custom_call.1} parent=11 // pred_check
          %p375 = pneg %p280
        $region46: #{tpu_custom_call.1} parent=11 // pred_check_branch
          %377 = sbr.rel (%p375) target = $region48
        $region47: #{tpu_custom_call.1} parent=11 // pred_region
          _
        $region48: #{tpu_custom_call.1} parent=11 // pred_fallthru
          _
      $region12: #{tpu_custom_call.1} parent=5 // pred_fallthru
        _
      %p378 = scmp.lt.s32.totalorder %s25, 4
      // Predicated region
      $region49: #{tpu_custom_call.1} parent=5 // pred_check
        %p379 = pneg %p378
      $region50: #{tpu_custom_call.1} parent=5 // pred_check_branch
        %381 = sbr.rel (%p379) target = $region52
      $region51: #{tpu_custom_call.1} parent=5 // pred_region
        // Predicated region
        $region53: #{tpu_custom_call.1} parent=51 // pred_check
          %p382 = pneg %p57
        $region54: #{tpu_custom_call.1} parent=51 // pred_check_branch
          %384 = sbr.rel (%p382) target = $region56
        $region55: #{tpu_custom_call.1} parent=51 // pred_region
          %p385 = scmp.lt.s32.totalorder %s32, 1
          %s386 = scalar_select %p385, %s32, 1
          %s387 = smul.addr %s386, 16
          %s388 = smul.addr %s387, 8
          %s389 = scalar_lea.vmem %s0, %s388
        $region56: #{tpu_custom_call.1} parent=51 // pred_fallthru
          _
        // Predicated region
        $region57: #{tpu_custom_call.1} parent=51 // pred_check
          %p390 = pneg %p85
        $region58: #{tpu_custom_call.1} parent=51 // pred_check_branch
          %392 = sbr.rel (%p390) target = $region60
        $region59: #{tpu_custom_call.1} parent=51 // pred_region
          %s393 = sand.u32 %s75, 1
          %s394 = scalar_lea.sflag [#allocation6], %s393
          %s395 = sand.u32 %s75, 1
          %s396 = smul.addr %s395, 64
          %s397 = scalar_lea.vmem [#allocation5], %s396
          %s399 = ssub.s32 1024, 1024
          %400 = vsyncadd %s394, %s399
          %s401 = smul.addr %s32, 16
          %s402 = sadd.s32 %s33, %s401
          %s403 = smul.addr %s402, 128
          %s404 = scalar_lea.hbm %s1, %s403
          %s405 = sshll.u32 %s397, 4
          %s406 = int_to_ptr.vmem [resolvable:$true] %s405
          %411 = dma.hbm_to_vmem [thread:$0]  %s404, 1024, %s406, %s394, 256, 128, 8
        $region60: #{tpu_custom_call.1} parent=51 // pred_fallthru
          _
      $region52: #{tpu_custom_call.1} parent=5 // pred_fallthru
        _
      %p412 = scmp.le.s32.totalorder 1, %s25
      %p413 = scmp.lt.s32.totalorder %s25, 5
      %p414 = pnand %p412, %p413
      %p415 = pneg %p414
      // Predicated region
      $region61: #{tpu_custom_call.1} parent=5 // pred_check
        _
      $region62: #{tpu_custom_call.1} parent=5 // pred_check_branch
        %417 = sbr.rel (%p414) target = $region64
      $region63: #{tpu_custom_call.1} parent=5 // pred_region
        %s418 = ssub.s32 %s25, 1
        %s419 = sand.u32 %s78, 1
        %s420 = scalar_lea.sflag [#allocation6], %s419
        %s421 = sand.u32 %s78, 1
        %s422 = smul.addr %s421, 64
        %s423 = scalar_lea.vmem [#allocation5], %s422
        // Predicated region
        $region65: #{tpu_custom_call.1} parent=63 // pred_check
          %p424 = pneg %p91
        $region66: #{tpu_custom_call.1} parent=63 // pred_check_branch
          %426 = sbr.rel (%p424) target = $region68
        $region67: #{tpu_custom_call.1} parent=63 // pred_region
          %427 = dma.done %s420, 1024
        $region68: #{tpu_custom_call.1} parent=63 // pred_fallthru
          _
        // Predicated region
        $region69: #{tpu_custom_call.1} parent=63 // pred_check
          %p428 = pneg %p175
        $region70: #{tpu_custom_call.1} parent=63 // pred_check_branch
          %430 = sbr.rel (%p428) target = $region72
        $region71: #{tpu_custom_call.1} parent=63 // pred_region
          %431 = dma.done [#allocation9], 512
        $region72: #{tpu_custom_call.1} parent=63 // pred_fallthru
          _
        // Predicated region
        $region73: #{tpu_custom_call.1} parent=63 // pred_check
          %p432 = pneg %p196
        $region74: #{tpu_custom_call.1} parent=63 // pred_check_branch
          %434 = sbr.rel (%p432) target = $region76
        $region75: #{tpu_custom_call.1} parent=63 // pred_region
          %435 = dma.done [#allocation9], 16
        $region76: #{tpu_custom_call.1} parent=63 // pred_fallthru
          _
        // Predicated region
        $region77: #{tpu_custom_call.1} parent=63 // pred_check
          %p436 = pneg %p217
        $region78: #{tpu_custom_call.1} parent=63 // pred_check_branch
          %438 = sbr.rel (%p436) target = $region80
        $region79: #{tpu_custom_call.1} parent=63 // pred_region
          %439 = dma.done [#allocation12], 512
        $region80: #{tpu_custom_call.1} parent=63 // pred_fallthru
          _
        %p440 = scmp.lt.s32.totalorder %s34, 1
        %s441 = scalar_select %p440, %s34, 1
        %s442 = smul.addr %s441, 16
        %s443 = smul.addr %s442, 8
        %s444 = scalar_lea.vmem %s0, %s443
        %p445 = pneg %p63
        %p446 = pneg %p60
        %s447 = sand.u32 %s78, 1
        %s448 = scalar_lea.sflag [#allocation6], %s447
        %s449 = sand.u32 %s78, 1
        %s450 = smul.addr %s449, 64
        %s451 = scalar_lea.vmem [#allocation5], %s450
        %p452 = pneg %p91
        %p453 = pneg %p88
        %p454 = pneg %p112
        %p455 = pneg %p109
        %p456 = pneg %p133
        %p457 = pneg %p130
        %p458 = pneg %p154
        %p459 = pneg %p151
        %p460 = pneg %p175
        %p461 = pneg %p172
        %p462 = pneg %p196
        %p463 = pneg %p193
        %p464 = pneg %p217
        %p465 = pneg %p214
        %p466 = pneg %p238
        %p467 = pneg %p235
        %p468 = pneg %p259
        %p469 = pneg %p256
        %p470 = pneg %p280
        %p471 = pneg %p277
        %p472 = pneg %p308
        %p473 = pneg %p305
        %s474 = sand.u32 %s295, 1
        %s475 = scalar_lea.sflag [#allocation7], %s474
        %s476 = sand.u32 %s295, 1
        %s477 = smul.addr %s476, 64
        %s478 = scalar_lea.vmem [#allocation13], %s477
        %p479 = scmp.lt.s32.totalorder %s34, 1
        %s480 = scalar_select %p479, %s34, 1
        %s481 = smul.addr %s480, 16
        %s482 = smul.addr %s481, 8
        %s483 = scalar_lea.vmem %s0, %s482
        %p485 = scmp.eq.s32.totalorder %s35, 0
        // Predicated region
        $region81: #{tpu_custom_call.1} parent=63 // pred_check
          %p486 = pneg %p485
        $region82: #{tpu_custom_call.1} parent=63 // pred_check_branch
          %488 = sbr.rel (%p486) target = $region84
        $region83: #{tpu_custom_call.1} parent=63 // pred_region
          %v489 = vld [vmem:[%s483] sm:$0xff]
          %v490 = vld [vmem:[%s483 + $0x8] sm:$0xff]
          %v491 = vld [vmem:[%s483 + $0x10] sm:$0xff]
          %v492 = vld [vmem:[%s483 + $0x18] sm:$0xff]
          %v493 = vld [vmem:[%s483 + $0x20] sm:$0xff]
          %v494 = vld [vmem:[%s483 + $0x28] sm:$0xff]
          %v495 = vld [vmem:[%s483 + $0x30] sm:$0xff]
          %v496 = vld [vmem:[%s483 + $0x38] sm:$0xff]
          %v497 = vld [vmem:[%s483 + $0x40] sm:$0xff]
          %v498 = vld [vmem:[%s483 + $0x48] sm:$0xff]
          %v499 = vld [vmem:[%s483 + $0x50] sm:$0xff]
          %v500 = vld [vmem:[%s483 + $0x58] sm:$0xff]
          %v501 = vld [vmem:[%s483 + $0x60] sm:$0xff]
          %v502 = vld [vmem:[%s483 + $0x68] sm:$0xff]
          %v503 = vld [vmem:[%s483 + $0x70] sm:$0xff]
          %v504 = vld [vmem:[%s483 + $0x78] sm:$0xff]
          %v505 = vld [vmem:[%s2] sm:$0xff]
          %v506 = vld [vmem:[%s2 + $0x8] sm:$0xff]
          %v507 = vld [vmem:[%s2 + $0x10] sm:$0xff]
          %v508 = vld [vmem:[%s2 + $0x18] sm:$0xff]
          %v509 = vld [vmem:[%s2 + $0x20] sm:$0xff]
          %v510 = vld [vmem:[%s2 + $0x28] sm:$0xff]
          %v511 = vld [vmem:[%s2 + $0x30] sm:$0xff]
          %v512 = vld [vmem:[%s2 + $0x38] sm:$0xff]
          %v513 = vadd.f32 %v489, %v490
          %514 = vadd.xlane.f32.xlu0 %v513
          %v515 = vpop.xlane.xlu0 %514
          %v516 = vadd.f32 %v491, %v492
          %517 = vadd.xlane.f32.xlu0 %v516
          %v518 = vpop.xlane.xlu0 %517
          %v519 = vadd.f32 %v493, %v494
          %520 = vadd.xlane.f32.xlu0 %v519
          %v521 = vpop.xlane.xlu0 %520
          %v522 = vadd.f32 %v495, %v496
          %523 = vadd.xlane.f32.xlu0 %v522
          %v524 = vpop.xlane.xlu0 %523
          %v525 = vadd.f32 %v497, %v498
          %526 = vadd.xlane.f32.xlu0 %v525
          %v527 = vpop.xlane.xlu0 %526
          %v528 = vadd.f32 %v499, %v500
          %529 = vadd.xlane.f32.xlu0 %v528
          %v530 = vpop.xlane.xlu0 %529
          %v531 = vadd.f32 %v501, %v502
          %532 = vadd.xlane.f32.xlu0 %v531
          %v533 = vpop.xlane.xlu0 %532
          %v534 = vadd.f32 %v503, %v504
          %535 = vadd.xlane.f32.xlu0 %v534
          %v536 = vpop.xlane.xlu0 %535
          %v537 = vmul.f32 %v505, %v515
          %v538 = vmul.f32 %v506, %v518
          %v539 = vmul.f32 %v507, %v521
          %v540 = vmul.f32 %v508, %v524
          %v541 = vmul.f32 %v509, %v527
          %v542 = vmul.f32 %v510, %v530
          %v543 = vmul.f32 %v511, %v533
          %v544 = vmul.f32 %v512, %v536
          %vm545 = vcmask 261120
          %v546 = vsel %vm545, %v537, 0.0
          %v547 = vsel %vm545, %v538, 0.0
          %v548 = vadd.f32 %v546, %v547
          %v549 = vsel %vm545, %v539, 0.0
          %v550 = vadd.f32 %v548, %v549
          %v551 = vsel %vm545, %v540, 0.0
          %v552 = vadd.f32 %v550, %v551
          %v553 = vsel %vm545, %v541, 0.0
          %v554 = vadd.f32 %v552, %v553
          %v555 = vsel %vm545, %v542, 0.0
          %v556 = vadd.f32 %v554, %v555
          %v557 = vsel %vm545, %v543, 0.0
          %v558 = vadd.f32 %v556, %v557
          %v559 = vsel %vm545, %v544, 0.0
          %v560 = vadd.f32 %v558, %v559
          %v561 = vrot.slane %v560, 4
          %v562 = vadd.f32 %v560, %v561
          %v563 = vrot.slane %v562, 2
          %v564 = vadd.f32 %v562, %v563
          %v565 = vrot.slane %v564, 1
          %v566 = vadd.f32 %v564, %v565
          %v567 = vmul.f32 %v566, 0.001953125
          %v568 = vmul.f32 %v505, %v567
          %v569 = vmul.f32 %v506, %v567
          %v570 = vmul.f32 %v507, %v567
          %v571 = vmul.f32 %v508, %v567
          %v572 = vmul.f32 %v509, %v567
          %v573 = vmul.f32 %v510, %v567
          %v574 = vmul.f32 %v511, %v567
          %v575 = vmul.f32 %v512, %v567
          %v576 = vsel %vm545, %v568, 0.0
          %577 = vadd.xlane.f32.xlu0 %v576
          %v578 = vpop.xlane.xlu0 %577
          %v579 = vsel %vm545, %v569, 0.0
          %580 = vadd.xlane.f32.xlu0 %v579
          %v581 = vpop.xlane.xlu0 %580
          %v582 = vsel %vm545, %v570, 0.0
          %583 = vadd.xlane.f32.xlu0 %v582
          %v584 = vpop.xlane.xlu0 %583
          %v585 = vsel %vm545, %v571, 0.0
          %586 = vadd.xlane.f32.xlu0 %v585
          %v587 = vpop.xlane.xlu0 %586
          %v588 = vsel %vm545, %v572, 0.0
          %589 = vadd.xlane.f32.xlu0 %v588
          %v590 = vpop.xlane.xlu0 %589
          %v591 = vsel %vm545, %v573, 0.0
          %592 = vadd.xlane.f32.xlu0 %v591
          %v593 = vpop.xlane.xlu0 %592
          %v594 = vsel %vm545, %v574, 0.0
          %595 = vadd.xlane.f32.xlu0 %v594
          %v596 = vpop.xlane.xlu0 %595
          %v597 = vsel %vm545, %v575, 0.0
          %598 = vadd.xlane.f32.xlu0 %v597
          %v599 = vpop.xlane.xlu0 %598
          %v600 = vsub.f32 %v489, %v578
          %v601 = vsub.f32 %v490, %v578
          %v602 = vsub.f32 %v491, %v581
          %v603 = vsub.f32 %v492, %v581
          %v604 = vsub.f32 %v493, %v584
          %v605 = vsub.f32 %v494, %v584
          %v606 = vsub.f32 %v495, %v587
          %v607 = vsub.f32 %v496, %v587
          %v608 = vsub.f32 %v497, %v590
          %v609 = vsub.f32 %v498, %v590
          %v610 = vsub.f32 %v499, %v593
          %v611 = vsub.f32 %v500, %v593
          %v612 = vsub.f32 %v501, %v596
          %v613 = vsub.f32 %v502, %v596
          %v614 = vsub.f32 %v503, %v599
          %v615 = vsub.f32 %v504, %v599
          %v616 = vmul.f32 %v600, %v600
          %v617 = vmul.f32 %v601, %v601
          %v618 = vmul.f32 %v602, %v602
          %v619 = vmul.f32 %v603, %v603
          %v620 = vmul.f32 %v604, %v604
          %v621 = vmul.f32 %v605, %v605
          %v622 = vmul.f32 %v606, %v606
          %v623 = vmul.f32 %v607, %v607
          %v624 = vmul.f32 %v608, %v608
          %v625 = vmul.f32 %v609, %v609
          %v626 = vmul.f32 %v610, %v610
          %v627 = vmul.f32 %v611, %v611
          %v628 = vmul.f32 %v612, %v612
          %v629 = vmul.f32 %v613, %v613
          %v630 = vmul.f32 %v614, %v614
          %v631 = vmul.f32 %v615, %v615
          %v632 = vadd.f32 %v616, %v617
          %633 = vadd.xlane.f32.xlu0 %v632
          %v634 = vpop.xlane.xlu0 %633
          %v635 = vadd.f32 %v618, %v619
          %636 = vadd.xlane.f32.xlu0 %v635
          %v637 = vpop.xlane.xlu0 %636
          %v638 = vadd.f32 %v620, %v621
          %639 = vadd.xlane.f32.xlu0 %v638
          %v640 = vpop.xlane.xlu0 %639
          %v641 = vadd.f32 %v622, %v623
          %642 = vadd.xlane.f32.xlu0 %v641
          %v643 = vpop.xlane.xlu0 %642
          %v644 = vadd.f32 %v624, %v625
          %645 = vadd.xlane.f32.xlu0 %v644
          %v646 = vpop.xlane.xlu0 %645
          %v647 = vadd.f32 %v626, %v627
          %648 = vadd.xlane.f32.xlu0 %v647
          %v649 = vpop.xlane.xlu0 %648
          %v650 = vadd.f32 %v628, %v629
          %651 = vadd.xlane.f32.xlu0 %v650
          %v652 = vpop.xlane.xlu0 %651
          %v653 = vadd.f32 %v630, %v631
          %654 = vadd.xlane.f32.xlu0 %v653
          %v655 = vpop.xlane.xlu0 %654
          %v656 = vmul.f32 %v505, %v634
          %v657 = vmul.f32 %v506, %v637
          %v658 = vmul.f32 %v507, %v640
          %v659 = vmul.f32 %v508, %v643
          %v660 = vmul.f32 %v509, %v646
          %v661 = vmul.f32 %v510, %v649
          %v662 = vmul.f32 %v511, %v652
          %v663 = vmul.f32 %v512, %v655
          %v664 = vsel %vm545, %v656, 0.0
          %v665 = vsel %vm545, %v657, 0.0
          %v666 = vadd.f32 %v664, %v665
          %v667 = vsel %vm545, %v658, 0.0
          %v668 = vadd.f32 %v666, %v667
          %v669 = vsel %vm545, %v659, 0.0
          %v670 = vadd.f32 %v668, %v669
          %v671 = vsel %vm545, %v660, 0.0
          %v672 = vadd.f32 %v670, %v671
          %v673 = vsel %vm545, %v661, 0.0
          %v674 = vadd.f32 %v672, %v673
          %v675 = vsel %vm545, %v662, 0.0
          %v676 = vadd.f32 %v674, %v675
          %v677 = vsel %vm545, %v663, 0.0
          %v678 = vadd.f32 %v676, %v677
          %v679 = vrot.slane %v678, 4
          %v680 = vadd.f32 %v678, %v679
          %v681 = vrot.slane %v680, 2
          %v682 = vadd.f32 %v680, %v681
          %v683 = vrot.slane %v682, 1
          %v684 = vadd.f32 %v682, %v683
          %v685 = vmul.f32 %v684, 0.001953125
          %v686 = vadd.f32 %v685, 1e-06
          %v687 = vrsqrt.pop %v686
          %v688 = vmul.f32 %v505, %v687
          %v689 = vmul.f32 %v506, %v687
          %v690 = vmul.f32 %v507, %v687
          %v691 = vmul.f32 %v508, %v687
          %v692 = vmul.f32 %v509, %v687
          %v693 = vmul.f32 %v510, %v687
          %v694 = vmul.f32 %v511, %v687
          %v695 = vmul.f32 %v512, %v687
          %v696 = vsel %vm545, %v688, 0.0
          %697 = vadd.xlane.f32.xlu0 %v696
          %v698 = vpop.xlane.xlu0 %697
          %v699 = vsel %vm545, %v689, 0.0
          %700 = vadd.xlane.f32.xlu0 %v699
          %v701 = vpop.xlane.xlu0 %700
          %v702 = vsel %vm545, %v690, 0.0
          %703 = vadd.xlane.f32.xlu0 %v702
          %v704 = vpop.xlane.xlu0 %703
          %v705 = vsel %vm545, %v691, 0.0
          %706 = vadd.xlane.f32.xlu0 %v705
          %v707 = vpop.xlane.xlu0 %706
          %v708 = vsel %vm545, %v692, 0.0
          %709 = vadd.xlane.f32.xlu0 %v708
          %v710 = vpop.xlane.xlu0 %709
          %v711 = vsel %vm545, %v693, 0.0
          %712 = vadd.xlane.f32.xlu0 %v711
          %v713 = vpop.xlane.xlu0 %712
          %v714 = vsel %vm545, %v694, 0.0
          %715 = vadd.xlane.f32.xlu0 %v714
          %v716 = vpop.xlane.xlu0 %715
          %v717 = vsel %vm545, %v695, 0.0
          %718 = vadd.xlane.f32.xlu0 %v717
          %v719 = vpop.xlane.xlu0 %718
          %v720 = vmul.f32 %v600, %v698
          %v721 = vmul.f32 %v601, %v698
          %v722 = vmul.f32 %v602, %v701
          %v723 = vmul.f32 %v603, %v701
          %v724 = vmul.f32 %v604, %v704
          %v725 = vmul.f32 %v605, %v704
          %v726 = vmul.f32 %v606, %v707
          %v727 = vmul.f32 %v607, %v707
          %v728 = vmul.f32 %v608, %v710
          %v729 = vmul.f32 %v609, %v710
          %v730 = vmul.f32 %v610, %v713
          %v731 = vmul.f32 %v611, %v713
          %v732 = vmul.f32 %v612, %v716
          %v733 = vmul.f32 %v613, %v716
          %v734 = vmul.f32 %v614, %v719
          %v735 = vmul.f32 %v615, %v719
          %v736 = vpack.c.bf16 %v722, %v720
          %v737 = vpack.c.bf16 %v723, %v721
          %v738 = vpack.c.bf16 %v726, %v724
          %v739 = vpack.c.bf16 %v727, %v725
          %v740 = vpack.c.bf16 %v730, %v728
          %v741 = vpack.c.bf16 %v731, %v729
          %v742 = vpack.c.bf16 %v734, %v732
          %v743 = vpack.c.bf16 %v735, %v733
          %744 = vst [vmem:[#allocation2] sm:$0xff] %v736
          %745 = vst [vmem:[#allocation2 + $0x8] sm:$0xff] %v737
          %746 = vst [vmem:[#allocation2 + $0x10] sm:$0xff] %v738
          %747 = vst [vmem:[#allocation2 + $0x18] sm:$0xff] %v739
          %748 = vst [vmem:[#allocation2 + $0x20] sm:$0xff] %v740
          %749 = vst [vmem:[#allocation2 + $0x28] sm:$0xff] %v741
          %750 = vst [vmem:[#allocation2 + $0x30] sm:$0xff] %v742
          %751 = vst [vmem:[#allocation2 + $0x38] sm:$0xff] %v743
          %v752 = vld [vmem:[#allocation8] sm:$0xf]
          %v753 = vld [vmem:[#allocation8 + $0x4] sm:$0xf]
          %v754 = vld [vmem:[#allocation8 + $0x8] sm:$0xf]
          %v755 = vld [vmem:[#allocation8 + $0xc] sm:$0xf]
          %v756 = vld [vmem:[#allocation8 + $0x10] sm:$0xf]
          %v757 = vld [vmem:[#allocation8 + $0x14] sm:$0xf]
          %v758 = vld [vmem:[#allocation8 + $0x18] sm:$0xf]
          %v759 = vld [vmem:[#allocation8 + $0x1c] sm:$0xf]
          %v760 = vld [vmem:[#allocation10] sm:$0x1]
          %v762 = vlaneseq
          %v763 = vshrl.u32 %v762, 7
          %v764 = vsub.s32 0, %v763
          %v765 = vrot.slane %v760, %v764
          %767 = vxpose.xlu0.c.b16.start [1/8] %v736, 128
          %768 = vxpose.xlu0.c.b16.cont [2/8] %v738, 128
          %769 = vxpose.xlu0.c.b16.cont [3/8] %v740, 128
          %770 = vxpose.xlu0.c.b16.cont [4/8] %v742, 128
          %771 = vxpose.xlu0.c.b16.cont [5/8] 0, 128
          %772 = vxpose.xlu0.c.b16.cont [6/8] 0, 128
          %773 = vxpose.xlu0.c.b16.cont [7/8] 0, 128
          %774 = vxpose.xlu0.c.b16.end [8/8] 0, 128
          %v775 = vpop.trf.xlu0
          %v776 = vpop.trf.xlu0
          %v777 = vpop.trf.xlu0
          %v778 = vpop.trf.xlu0
          %v779 = vpop.trf.xlu0
          %v780 = vpop.trf.xlu0
          %v781 = vpop.trf.xlu0
          %v782 = vpop.trf.xlu0
          %783 = vxpose.xlu0.c.b16.start [1/8] %v737, 128
          %784 = vxpose.xlu0.c.b16.cont [2/8] %v739, 128
          %785 = vxpose.xlu0.c.b16.cont [3/8] %v741, 128
          %786 = vxpose.xlu0.c.b16.cont [4/8] %v743, 128
          %787 = vxpose.xlu0.c.b16.cont [5/8] 0, 128
          %788 = vxpose.xlu0.c.b16.cont [6/8] 0, 128
          %789 = vxpose.xlu0.c.b16.cont [7/8] 0, 128
          %790 = vxpose.xlu0.c.b16.end [8/8] 0, 128
          %v791 = vpop.trf.xlu0
          %v792 = vpop.trf.xlu0
          %v793 = vpop.trf.xlu0
          %v794 = vpop.trf.xlu0
          %v795 = vpop.trf.xlu0
          %v796 = vpop.trf.xlu0
          %v797 = vpop.trf.xlu0
          %v798 = vpop.trf.xlu0
          %v807 = vunpack.c.l.b16 %v752
          %v808 = vunpack.c.l.b16 %v753
          %v809 = vunpack.c.l.b16 %v754
          %v810 = vunpack.c.l.b16 %v755
          %v811 = vunpack.c.l.b16 %v756
          %v812 = vunpack.c.l.b16 %v757
          %v813 = vunpack.c.l.b16 %v758
          %v814 = vunpack.c.l.b16 %v759
          %v815 = vpack.c.b16 %v808, %v807
          %v816 = vpack.c.b16 %v810, %v809
          %v817 = vpack.c.b16 %v812, %v811
          %v818 = vpack.c.b16 %v814, %v813
          %vm823 = vcmask 523264
          %v825 = vsel %vm823, %v775, 0
          %v828 = vsel %vm823, %v776, 0
          %v831 = vsel %vm823, %v777, 0
          %v834 = vsel %vm823, %v778, 0
          %v837 = vsel %vm823, %v779, 0
          %v840 = vsel %vm823, %v780, 0
          %v843 = vsel %vm823, %v781, 0
          %v846 = vsel %vm823, %v782, 0
          %v849 = vsel %vm823, %v791, 0
          %v852 = vsel %vm823, %v792, 0
          %v855 = vsel %vm823, %v793, 0
          %v858 = vsel %vm823, %v794, 0
          %v861 = vsel %vm823, %v795, 0
          %v864 = vsel %vm823, %v796, 0
          %v867 = vsel %vm823, %v797, 0
          %v870 = vsel %vm823, %v798, 0
          %872 = vmatprep.subr.bf16.mxu0 0
          %873 = vmatpush1.bf16.msra.mxu0 %v815
          %874 = vmatprep.subr.bf16.mxu0 0
          %875 = vmatpush1.bf16.msra.mxu0 %v816
          %876 = vmatprep.subr.bf16.mxu0 0
          %877 = vmatpush1.bf16.msra.mxu0 %v817
          %878 = vmatprep.subr.bf16.mxu0 0
          %879 = vmatpush1.bf16.msra.mxu0 %v818
          %880 = vmatprep.subr.bf16.mxu0 0
          %881 = vmatpush1.bf16.msra.mxu0 0
          %882 = vmatprep.subr.bf16.mxu0 0
          %883 = vmatpush1.bf16.msra.mxu0 0
          %884 = vmatprep.subr.bf16.mxu0 0
          %885 = vmatpush1.bf16.msra.mxu0 0
          %886 = vmatprep.subr.bf16.mxu0 0
          %887 = vmatpush1.bf16.msra.mxu0 0
          %888 = vmatprep.subr.bf16.mxu0 0
          %889 = vmatpush1.bf16.msra.mxu0 0
          %890 = vmatprep.subr.bf16.mxu0 0
          %891 = vmatpush1.bf16.msra.mxu0 0
          %892 = vmatprep.subr.bf16.mxu0 0
          %893 = vmatpush1.bf16.msra.mxu0 0
          %894 = vmatprep.subr.bf16.mxu0 0
          %895 = vmatpush1.bf16.msra.mxu0 0
          %896 = vmatprep.subr.bf16.mxu0 0
          %897 = vmatpush1.bf16.msra.mxu0 0
          %898 = vmatprep.subr.bf16.mxu0 0
          %899 = vmatpush1.bf16.msra.mxu0 0
          %900 = vmatprep.subr.bf16.mxu0 0
          %901 = vmatpush1.bf16.msra.mxu0 0
          %902 = vmatprep.subr.bf16.mxu0 0
          %903 = vmatpush1.bf16.msra.mxu0 0
          %904 = vmatprep.mubr.bf16.mxu0 0
          %905 = vmatmul.mubr.bf16.gmra.mrb[0].mxu0 %v825
          %v906 = vpop.f32.mrb[0].mxu0
          %v907 = vadd.f32 %v765, %v906
          %v908 = vpop.f32.mrb[0].mxu0
          %v909 = vpop.f32.mrb[0].mxu0
          %v910 = vadd.f32 %v765, %v909
          %v911 = vpop.f32.mrb[0].mxu0
          %912 = vmatprep.mubr.bf16.mxu0 0
          %913 = vmatmul.mubr.bf16.gmra.mrb[0].mxu0 %v828
          %v914 = vpop.f32.mrb[0].mxu0
          %v915 = vadd.f32 %v765, %v914
          %v916 = vpop.f32.mrb[0].mxu0
          %v917 = vpop.f32.mrb[0].mxu0
          %v918 = vadd.f32 %v765, %v917
          %v919 = vpop.f32.mrb[0].mxu0
          %920 = vmatprep.mubr.bf16.mxu0 0
          %921 = vmatmul.mubr.bf16.gmra.mrb[0].mxu0 %v831
          %v922 = vpop.f32.mrb[0].mxu0
          %v923 = vadd.f32 %v765, %v922
          %v924 = vpop.f32.mrb[0].mxu0
          %v925 = vpop.f32.mrb[0].mxu0
          %v926 = vadd.f32 %v765, %v925
          %v927 = vpop.f32.mrb[0].mxu0
          %928 = vmatprep.mubr.bf16.mxu0 0
          %929 = vmatmul.mubr.bf16.gmra.mrb[0].mxu0 %v834
          %v930 = vpop.f32.mrb[0].mxu0
          %v931 = vadd.f32 %v765, %v930
          %v932 = vpop.f32.mrb[0].mxu0
          %v933 = vpop.f32.mrb[0].mxu0
          %v934 = vadd.f32 %v765, %v933
          %v935 = vpop.f32.mrb[0].mxu0
          %936 = vmatprep.mubr.bf16.mxu0 0
          %937 = vmatmul.mubr.bf16.gmra.mrb[0].mxu0 %v837
          %v938 = vpop.f32.mrb[0].mxu0
          %v939 = vadd.f32 %v765, %v938
          %v940 = vpop.f32.mrb[0].mxu0
          %v941 = vpop.f32.mrb[0].mxu0
          %v942 = vadd.f32 %v765, %v941
          %v943 = vpop.f32.mrb[0].mxu0
          %944 = vmatprep.mubr.bf16.mxu0 0
          %945 = vmatmul.mubr.bf16.gmra.mrb[0].mxu0 %v840
          %v946 = vpop.f32.mrb[0].mxu0
          %v947 = vadd.f32 %v765, %v946
          %v948 = vpop.f32.mrb[0].mxu0
          %v949 = vpop.f32.mrb[0].mxu0
          %v950 = vadd.f32 %v765, %v949
          %v951 = vpop.f32.mrb[0].mxu0
          %952 = vmatprep.mubr.bf16.mxu0 0
          %953 = vmatmul.mubr.bf16.gmra.mrb[0].mxu0 %v843
          %v954 = vpop.f32.mrb[0].mxu0
          %v955 = vadd.f32 %v765, %v954
          %v956 = vpop.f32.mrb[0].mxu0
          %v957 = vpop.f32.mrb[0].mxu0
          %v958 = vadd.f32 %v765, %v957
          %v959 = vpop.f32.mrb[0].mxu0
          %960 = vmatprep.mubr.bf16.mxu0 0
          %961 = vmatmul.mubr.bf16.gmra.mrb[0].mxu0 %v846
          %v962 = vpop.f32.mrb[0].mxu0
          %v963 = vadd.f32 %v765, %v962
          %v964 = vpop.f32.mrb[0].mxu0
          %v965 = vpop.f32.mrb[0].mxu0
          %v966 = vadd.f32 %v765, %v965
          %v967 = vpop.f32.mrb[0].mxu0
          %968 = vmatprep.mubr.bf16.mxu0 0
          %969 = vmatmul.mubr.bf16.gmra.mrb[0].mxu0 %v849
          %v970 = vpop.f32.mrb[0].mxu0
          %v971 = vadd.f32 %v765, %v970
          %v972 = vpop.f32.mrb[0].mxu0
          %v973 = vpop.f32.mrb[0].mxu0
          %v974 = vadd.f32 %v765, %v973
          %v975 = vpop.f32.mrb[0].mxu0
          %976 = vmatprep.mubr.bf16.mxu0 0
          %977 = vmatmul.mubr.bf16.gmra.mrb[0].mxu0 %v852
          %v978 = vpop.f32.mrb[0].mxu0
          %v979 = vadd.f32 %v765, %v978
          %v980 = vpop.f32.mrb[0].mxu0
          %v981 = vpop.f32.mrb[0].mxu0
          %v982 = vadd.f32 %v765, %v981
          %v983 = vpop.f32.mrb[0].mxu0
          %984 = vmatprep.mubr.bf16.mxu0 0
          %985 = vmatmul.mubr.bf16.gmra.mrb[0].mxu0 %v855
          %v986 = vpop.f32.mrb[0].mxu0
          %v987 = vadd.f32 %v765, %v986
          %v988 = vpop.f32.mrb[0].mxu0
          %v989 = vpop.f32.mrb[0].mxu0
          %v990 = vadd.f32 %v765, %v989
          %v991 = vpop.f32.mrb[0].mxu0
          %992 = vmatprep.mubr.bf16.mxu0 0
          %993 = vmatmul.mubr.bf16.gmra.mrb[0].mxu0 %v858
          %v994 = vpop.f32.mrb[0].mxu0
          %v995 = vadd.f32 %v765, %v994
          %v996 = vpop.f32.mrb[0].mxu0
          %v997 = vpop.f32.mrb[0].mxu0
          %v998 = vadd.f32 %v765, %v997
          %v999 = vpop.f32.mrb[0].mxu0
          %1000 = vmatprep.mubr.bf16.mxu0 0
          %1001 = vmatmul.mubr.bf16.gmra.mrb[0].mxu0 %v861
          %v1002 = vpop.f32.mrb[0].mxu0
          %v1003 = vadd.f32 %v765, %v1002
          %v1004 = vpop.f32.mrb[0].mxu0
          %v1005 = vpop.f32.mrb[0].mxu0
          %v1006 = vadd.f32 %v765, %v1005
          %v1007 = vpop.f32.mrb[0].mxu0
          %1008 = vmatprep.mubr.bf16.mxu0 0
          %1009 = vmatmul.mubr.bf16.gmra.mrb[0].mxu0 %v864
          %v1010 = vpop.f32.mrb[0].mxu0
          %v1011 = vadd.f32 %v765, %v1010
          %v1012 = vpop.f32.mrb[0].mxu0
          %v1013 = vpop.f32.mrb[0].mxu0
          %v1014 = vadd.f32 %v765, %v1013
          %v1015 = vpop.f32.mrb[0].mxu0
          %1016 = vmatprep.mubr.bf16.mxu0 0
          %1017 = vmatmul.mubr.bf16.gmra.mrb[0].mxu0 %v867
          %v1018 = vpop.f32.mrb[0].mxu0
          %v1019 = vadd.f32 %v765, %v1018
          %v1020 = vpop.f32.mrb[0].mxu0
          %v1021 = vpop.f32.mrb[0].mxu0
          %v1022 = vadd.f32 %v765, %v1021
          %v1023 = vpop.f32.mrb[0].mxu0
          %1024 = vmatprep.mubr.bf16.mxu0 0
          %1025 = vmatmul.mubr.bf16.gmra.mrb[0].mxu0 %v870
          %v1026 = vpop.f32.mrb[0].mxu0
          %v1027 = vadd.f32 %v765, %v1026
          %v1028 = vpop.f32.mrb[0].mxu0
          %v1029 = vpop.f32.mrb[0].mxu0
          %v1030 = vadd.f32 %v765, %v1029
          %v1031 = vpop.f32.mrb[0].mxu0
          %1032 = vdwg.mxu0
          %v1033 = vpack.c.bf16 %v910, %v907
          %v1034 = vpack.c.bf16 %v918, %v915
          %v1035 = vpack.c.bf16 %v926, %v923
          %v1036 = vpack.c.bf16 %v934, %v931
          %v1037 = vpack.c.bf16 %v942, %v939
          %v1038 = vpack.c.bf16 %v950, %v947
          %v1039 = vpack.c.bf16 %v958, %v955
          %v1040 = vpack.c.bf16 %v966, %v963
          %v1041 = vpack.c.bf16 %v974, %v971
          %v1042 = vpack.c.bf16 %v982, %v979
          %v1043 = vpack.c.bf16 %v990, %v987
          %v1044 = vpack.c.bf16 %v998, %v995
          %v1045 = vpack.c.bf16 %v1006, %v1003
          %v1046 = vpack.c.bf16 %v1014, %v1011
          %v1047 = vpack.c.bf16 %v1022, %v1019
          %v1048 = vpack.c.bf16 %v1030, %v1027
          %1049 = vst.msk [vmem:[#allocation3] sm:$0xff] %vm823, %v1033
          %1050 = vst.msk [vmem:[#allocation3 + $0x8] sm:$0xff] %vm823, %v1034
          %1051 = vst.msk [vmem:[#allocation3 + $0x10] sm:$0xff] %vm823, %v1035
          %1052 = vst.msk [vmem:[#allocation3 + $0x18] sm:$0xff] %vm823, %v1036
          %1053 = vst.msk [vmem:[#allocation3 + $0x20] sm:$0xff] %vm823, %v1037
          %1054 = vst.msk [vmem:[#allocation3 + $0x28] sm:$0xff] %vm823, %v1038
          %1055 = vst.msk [vmem:[#allocation3 + $0x30] sm:$0xff] %vm823, %v1039
          %1056 = vst.msk [vmem:[#allocation3 + $0x38] sm:$0xff] %vm823, %v1040
          %1057 = vst.msk [vmem:[#allocation3 + $0x40] sm:$0xff] %vm823, %v1041
          %1058 = vst.msk [vmem:[#allocation3 + $0x48] sm:$0xff] %vm823, %v1042
          %1059 = vst.msk [vmem:[#allocation3 + $0x50] sm:$0xff] %vm823, %v1043
          %1060 = vst.msk [vmem:[#allocation3 + $0x58] sm:$0xff] %vm823, %v1044
          %1061 = vst.msk [vmem:[#allocation3 + $0x60] sm:$0xff] %vm823, %v1045
          %1062 = vst.msk [vmem:[#allocation3 + $0x68] sm:$0xff] %vm823, %v1046
          %1063 = vst.msk [vmem:[#allocation3 + $0x70] sm:$0xff] %vm823, %v1047
          %1064 = vst.msk [vmem:[#allocation3 + $0x78] sm:$0xff] %vm823, %v1048
          %v1065 = vld [vmem:[#allocation11] sm:$0xf]
          %v1066 = vld [vmem:[#allocation11 + $0x4] sm:$0xf]
          %v1067 = vld [vmem:[#allocation11 + $0x8] sm:$0xf]
          %v1068 = vld [vmem:[#allocation11 + $0xc] sm:$0xf]
          %v1069 = vld [vmem:[#allocation11 + $0x10] sm:$0xf]
          %v1070 = vld [vmem:[#allocation11 + $0x14] sm:$0xf]
          %v1071 = vld [vmem:[#allocation11 + $0x18] sm:$0xf]
          %v1072 = vld [vmem:[#allocation11 + $0x1c] sm:$0xf]
          %v1073 = vld [vmem:[%s8] sm:$0xff]
          %v1074 = vld [vmem:[%s8 + $0x8] sm:$0xff]
          %v1075 = vld [vmem:[%s8 + $0x10] sm:$0xff]
          %v1076 = vld [vmem:[%s8 + $0x18] sm:$0xff]
          %v1077 = vld [vmem:[%s8 + $0x20] sm:$0xff]
          %v1078 = vld [vmem:[%s8 + $0x28] sm:$0xff]
          %v1079 = vld [vmem:[%s8 + $0x30] sm:$0xff]
          %v1080 = vld [vmem:[%s8 + $0x38] sm:$0xff]
          %1082 = vset.pattern.permute.xlu0 0
          %1083 = vperm.xlu0 %1082, %v1073
          %v1084 = vpop.permute.xlu0 %1083
          %1087 = vset.pattern.permute.xlu0 0
          %1088 = vperm.xlu0 %1087, %v1074
          %v1089 = vpop.permute.xlu0 %1088
          %1092 = vset.pattern.permute.xlu0 0
          %1093 = vperm.xlu0 %1092, %v1075
          %v1094 = vpop.permute.xlu0 %1093
          %1097 = vset.pattern.permute.xlu0 0
          %1098 = vperm.xlu0 %1097, %v1076
          %v1099 = vpop.permute.xlu0 %1098
          %1102 = vset.pattern.permute.xlu0 0
          %1103 = vperm.xlu0 %1102, %v1077
          %v1104 = vpop.permute.xlu0 %1103
          %1107 = vset.pattern.permute.xlu0 0
          %1108 = vperm.xlu0 %1107, %v1078
          %v1109 = vpop.permute.xlu0 %1108
          %1112 = vset.pattern.permute.xlu0 0
          %1113 = vperm.xlu0 %1112, %v1079
          %v1114 = vpop.permute.xlu0 %1113
          %1117 = vset.pattern.permute.xlu0 0
          %1118 = vperm.xlu0 %1117, %v1080
          %v1119 = vpop.permute.xlu0 %1118
          %v1129 = vunpack.c.l.b16 %v1065
          %v1130 = vunpack.c.l.b16 %v1066
          %v1131 = vunpack.c.l.b16 %v1067
          %v1132 = vunpack.c.l.b16 %v1068
          %v1133 = vunpack.c.l.b16 %v1069
          %v1134 = vunpack.c.l.b16 %v1070
          %v1135 = vunpack.c.l.b16 %v1071
          %v1136 = vunpack.c.l.b16 %v1072
          %v1137 = vpack.c.b16 %v1130, %v1129
          %v1138 = vpack.c.b16 %v1132, %v1131
          %v1139 = vpack.c.b16 %v1134, %v1133
          %v1140 = vpack.c.b16 %v1136, %v1135
          %v1142 = vsel %vm823, %v1137, 0
          %v1145 = vsel %vm823, %v1138, 0
          %v1148 = vsel %vm823, %v1139, 0
          %v1151 = vsel %vm823, %v1140, 0
          %1153 = vmatprep.subr.bf16.mxu0 %v737
          %1154 = vmatpush1.bf16.msra.mxu0 %v736
          %1155 = vmatprep.subr.bf16.mxu0 %v739
          %1156 = vmatpush1.bf16.msra.mxu0 %v738
          %1157 = vmatprep.subr.bf16.mxu0 %v741
          %1158 = vmatpush1.bf16.msra.mxu0 %v740
          %1159 = vmatprep.subr.bf16.mxu0 %v743
          %1160 = vmatpush1.bf16.msra.mxu0 %v742
          %1161 = vmatprep.subr.bf16.mxu0 0
          %1162 = vmatpush1.bf16.msra.mxu0 0
          %1163 = vmatprep.subr.bf16.mxu0 0
          %1164 = vmatpush1.bf16.msra.mxu0 0
          %1165 = vmatprep.subr.bf16.mxu0 0
          %1166 = vmatpush1.bf16.msra.mxu0 0
          %1167 = vmatprep.subr.bf16.mxu0 0
          %1168 = vmatpush1.bf16.msra.mxu0 0
          %1169 = vmatprep.subr.bf16.mxu0 0
          %1170 = vmatpush1.bf16.msra.mxu0 0
          %1171 = vmatprep.subr.bf16.mxu0 0
          %1172 = vmatpush1.bf16.msra.mxu0 0
          %1173 = vmatprep.subr.bf16.mxu0 0
          %1174 = vmatpush1.bf16.msra.mxu0 0
          %1175 = vmatprep.subr.bf16.mxu0 0
          %1176 = vmatpush1.bf16.msra.mxu0 0
          %1177 = vmatprep.subr.bf16.mxu0 0
          %1178 = vmatpush1.bf16.msra.mxu0 0
          %1179 = vmatprep.subr.bf16.mxu0 0
          %1180 = vmatpush1.bf16.msra.mxu0 0
          %1181 = vmatprep.subr.bf16.mxu0 0
          %1182 = vmatpush1.bf16.msra.mxu0 0
          %1183 = vmatprep.subr.bf16.mxu0 0
          %1184 = vmatpush1.bf16.msra.mxu0 0
          %1185 = vmatprep.mubr.bf16.mxu0 0
          %1186 = vmatmul.mubr.bf16.gmra.mrb[0].mxu0 %v1142
          %v1187 = vpop.f32.mrb[0].mxu0
          %v1188 = vadd.f32 %v1084, %v1187
          %v1189 = vpop.f32.mrb[0].mxu0
          %v1190 = vadd.f32 %v1084, %v1189
          %v1191 = vpop.f32.mrb[0].mxu0
          %v1192 = vadd.f32 %v1089, %v1191
          %v1193 = vpop.f32.mrb[0].mxu0
          %v1194 = vadd.f32 %v1089, %v1193
          %1195 = vmatprep.mubr.bf16.mxu0 0
          %1196 = vmatmul.mubr.bf16.gmra.mrb[0].mxu0 %v1145
          %v1197 = vpop.f32.mrb[0].mxu0
          %v1198 = vadd.f32 %v1094, %v1197
          %v1199 = vpop.f32.mrb[0].mxu0
          %v1200 = vadd.f32 %v1094, %v1199
          %v1201 = vpop.f32.mrb[0].mxu0
          %v1202 = vadd.f32 %v1099, %v1201
          %v1203 = vpop.f32.mrb[0].mxu0
          %v1204 = vadd.f32 %v1099, %v1203
          %1205 = vmatprep.mubr.bf16.mxu0 0
          %1206 = vmatmul.mubr.bf16.gmra.mrb[0].mxu0 %v1148
          %v1207 = vpop.f32.mrb[0].mxu0
          %v1208 = vadd.f32 %v1104, %v1207
          %v1209 = vpop.f32.mrb[0].mxu0
          %v1210 = vadd.f32 %v1104, %v1209
          %v1211 = vpop.f32.mrb[0].mxu0
          %v1212 = vadd.f32 %v1109, %v1211
          %v1213 = vpop.f32.mrb[0].mxu0
          %v1214 = vadd.f32 %v1109, %v1213
          %1215 = vmatprep.mubr.bf16.mxu0 0
          %1216 = vmatmul.mubr.bf16.gmra.mrb[0].mxu0 %v1151
          %v1217 = vpop.f32.mrb[0].mxu0
          %v1218 = vadd.f32 %v1114, %v1217
          %v1219 = vpop.f32.mrb[0].mxu0
          %v1220 = vadd.f32 %v1114, %v1219
          %v1221 = vpop.f32.mrb[0].mxu0
          %v1222 = vadd.f32 %v1119, %v1221
          %v1223 = vpop.f32.mrb[0].mxu0
          %v1224 = vadd.f32 %v1119, %v1223
          %1225 = vdwg.mxu0
          %v1226 = vpack.c.bf16 %v1192, %v1188
          %v1227 = vpack.c.bf16 %v1194, %v1190
          %v1228 = vpack.c.bf16 %v1202, %v1198
          %v1229 = vpack.c.bf16 %v1204, %v1200
          %v1230 = vpack.c.bf16 %v1212, %v1208
          %v1231 = vpack.c.bf16 %v1214, %v1210
          %v1232 = vpack.c.bf16 %v1222, %v1218
          %v1233 = vpack.c.bf16 %v1224, %v1220
          %1234 = vst [vmem:[#allocation4] sm:$0xff] %v1226
          %1235 = vst [vmem:[#allocation4 + $0x8] sm:$0xff] %v1227
          %1236 = vst [vmem:[#allocation4 + $0x10] sm:$0xff] %v1228
          %1237 = vst [vmem:[#allocation4 + $0x18] sm:$0xff] %v1229
          %1238 = vst [vmem:[#allocation4 + $0x20] sm:$0xff] %v1230
          %1239 = vst [vmem:[#allocation4 + $0x28] sm:$0xff] %v1231
          %1240 = vst [vmem:[#allocation4 + $0x30] sm:$0xff] %v1232
          %1241 = vst [vmem:[#allocation4 + $0x38] sm:$0xff] %v1233
        $region84: #{tpu_custom_call.1} parent=63 // pred_fallthru
          _
        %s1242 = smul.u32 %s35, 128
        %s1243 = sshra.s32 %s1242, 7
        %s1244 = sand.u32 %s1242, 127
        %s1245 = smul.addr %s1243, 8
        %s1246 = scalar_lea.vmem [#allocation2], %s1245
        %v1247 = vld [vmem:[%s1246] sm:$0xff]
        %v1248 = vld [vmem:[%s1246 + $0x10] sm:$0xff]
        %v1249 = vld [vmem:[%s1246 + $0x20] sm:$0xff]
        %v1250 = vld [vmem:[%s1246 + $0x30] sm:$0xff]
        %v1251 = vld [vmem:[%s3] sm:$0xf]
        %v1252 = vld [vmem:[%s3 + $0x4] sm:$0xf]
        %v1253 = vld [vmem:[%s3 + $0x8] sm:$0xf]
        %v1254 = vld [vmem:[%s3 + $0xc] sm:$0xf]
        %v1255 = vld [vmem:[%s3 + $0x10] sm:$0xf]
        %v1256 = vld [vmem:[%s3 + $0x14] sm:$0xf]
        %v1257 = vld [vmem:[%s3 + $0x18] sm:$0xf]
        %v1258 = vld [vmem:[%s3 + $0x1c] sm:$0xf]
        %v1259 = vld [vmem:[%s4] sm:$0xff]
        %v1260 = vld [vmem:[%s4 + $0x8] sm:$0xff]
        %v1261 = vld [vmem:[%s4 + $0x10] sm:$0xff]
        %v1262 = vld [vmem:[%s4 + $0x18] sm:$0xff]
        %v1263 = vld [vmem:[%s4 + $0x20] sm:$0xff]
        %v1264 = vld [vmem:[%s4 + $0x28] sm:$0xff]
        %v1265 = vld [vmem:[%s4 + $0x30] sm:$0xff]
        %v1266 = vld [vmem:[%s4 + $0x38] sm:$0xff]
        %1268 = vset.pattern.permute.xlu0 0
        %1269 = vperm.xlu0 %1268, %v1259
        %v1270 = vpop.permute.xlu0 %1269
        %1273 = vset.pattern.permute.xlu0 0
        %1274 = vperm.xlu0 %1273, %v1260
        %v1275 = vpop.permute.xlu0 %1274
        %1278 = vset.pattern.permute.xlu0 0
        %1279 = vperm.xlu0 %1278, %v1261
        %v1280 = vpop.permute.xlu0 %1279
        %1283 = vset.pattern.permute.xlu0 0
        %1284 = vperm.xlu0 %1283, %v1262
        %v1285 = vpop.permute.xlu0 %1284
        %1288 = vset.pattern.permute.xlu0 0
        %1289 = vperm.xlu0 %1288, %v1263
        %v1290 = vpop.permute.xlu0 %1289
        %1293 = vset.pattern.permute.xlu0 0
        %1294 = vperm.xlu0 %1293, %v1264
        %v1295 = vpop.permute.xlu0 %1294
        %1298 = vset.pattern.permute.xlu0 0
        %1299 = vperm.xlu0 %1298, %v1265
        %v1300 = vpop.permute.xlu0 %1299
        %1303 = vset.pattern.permute.xlu0 0
        %1304 = vperm.xlu0 %1303, %v1266
        %v1305 = vpop.permute.xlu0 %1304
        %v1315 = vunpack.c.l.b16 %v1251
        %v1316 = vunpack.c.l.b16 %v1252
        %v1317 = vunpack.c.l.b16 %v1253
        %v1318 = vunpack.c.l.b16 %v1254
        %v1319 = vunpack.c.l.b16 %v1255
        %v1320 = vunpack.c.l.b16 %v1256
        %v1321 = vunpack.c.l.b16 %v1257
        %v1322 = vunpack.c.l.b16 %v1258
        %v1323 = vpack.c.b16 %v1316, %v1315
        %v1324 = vpack.c.b16 %v1318, %v1317
        %v1325 = vpack.c.b16 %v1320, %v1319
        %v1326 = vpack.c.b16 %v1322, %v1321
        %vm1327 = vcmask 523264
        %v1329 = vsel %vm1327, %v1323, 0
        %v1332 = vsel %vm1327, %v1324, 0
        %v1335 = vsel %vm1327, %v1325, 0
        %v1338 = vsel %vm1327, %v1326, 0
        %1340 = vmatprep.subr.bf16.mxu0 0
        %1341 = vmatpush1.bf16.msra.mxu0 %v1247
        %1342 = vmatprep.subr.bf16.mxu0 0
        %1343 = vmatpush1.bf16.msra.mxu0 %v1248
        %1344 = vmatprep.subr.bf16.mxu0 0
        %1345 = vmatpush1.bf16.msra.mxu0 %v1249
        %1346 = vmatprep.subr.bf16.mxu0 0
        %1347 = vmatpush1.bf16.msra.mxu0 %v1250
        %1348 = vmatprep.subr.bf16.mxu0 0
        %1349 = vmatpush1.bf16.msra.mxu0 0
        %1350 = vmatprep.subr.bf16.mxu0 0
        %1351 = vmatpush1.bf16.msra.mxu0 0
        %1352 = vmatprep.subr.bf16.mxu0 0
        %1353 = vmatpush1.bf16.msra.mxu0 0
        %1354 = vmatprep.subr.bf16.mxu0 0
        %1355 = vmatpush1.bf16.msra.mxu0 0
        %1356 = vmatprep.subr.bf16.mxu0 0
        %1357 = vmatpush1.bf16.msra.mxu0 0
        %1358 = vmatprep.subr.bf16.mxu0 0
        %1359 = vmatpush1.bf16.msra.mxu0 0
        %1360 = vmatprep.subr.bf16.mxu0 0
        %1361 = vmatpush1.bf16.msra.mxu0 0
        %1362 = vmatprep.subr.bf16.mxu0 0
        %1363 = vmatpush1.bf16.msra.mxu0 0
        %1364 = vmatprep.subr.bf16.mxu0 0
        %1365 = vmatpush1.bf16.msra.mxu0 0
        %1366 = vmatprep.subr.bf16.mxu0 0
        %1367 = vmatpush1.bf16.msra.mxu0 0
        %1368 = vmatprep.subr.bf16.mxu0 0
        %1369 = vmatpush1.bf16.msra.mxu0 0
        %1370 = vmatprep.subr.bf16.mxu0 0
        %1371 = vmatpush1.bf16.msra.mxu0 0
        %1372 = vmatprep.mubr.bf16.mxu0 0
        %1373 = vmatmul.mubr.bf16.gmra.mrb[0].mxu0 %v1329
        %v1374 = vpop.f32.mrb[0].mxu0
        %v1375 = vadd.f32 %v1270, %v1374
        %v1376 = vpop.f32.mrb[0].mxu0
        %v1377 = vpop.f32.mrb[0].mxu0
        %v1378 = vadd.f32 %v1275, %v1377
        %v1379 = vpop.f32.mrb[0].mxu0
        %1380 = vmatprep.mubr.bf16.mxu0 0
        %1381 = vmatmul.mubr.bf16.gmra.mrb[0].mxu0 %v1332
        %v1382 = vpop.f32.mrb[0].mxu0
        %v1383 = vadd.f32 %v1280, %v1382
        %v1384 = vpop.f32.mrb[0].mxu0
        %v1385 = vpop.f32.mrb[0].mxu0
        %v1386 = vadd.f32 %v1285, %v1385
        %v1387 = vpop.f32.mrb[0].mxu0
        %1388 = vmatprep.mubr.bf16.mxu0 0
        %1389 = vmatmul.mubr.bf16.gmra.mrb[0].mxu0 %v1335
        %v1390 = vpop.f32.mrb[0].mxu0
        %v1391 = vadd.f32 %v1290, %v1390
        %v1392 = vpop.f32.mrb[0].mxu0
        %v1393 = vpop.f32.mrb[0].mxu0
        %v1394 = vadd.f32 %v1295, %v1393
        %v1395 = vpop.f32.mrb[0].mxu0
        %1396 = vmatprep.mubr.bf16.mxu0 0
        %1397 = vmatmul.mubr.bf16.gmra.mrb[0].mxu0 %v1338
        %v1398 = vpop.f32.mrb[0].mxu0
        %v1399 = vadd.f32 %v1300, %v1398
        %v1400 = vpop.f32.mrb[0].mxu0
        %v1401 = vpop.f32.mrb[0].mxu0
        %v1402 = vadd.f32 %v1305, %v1401
        %v1403 = vpop.f32.mrb[0].mxu0
        %1404 = vdwg.mxu0
        %v1405 = vpack.c.bf16 %v1378, %v1375
        %v1406 = vpack.c.bf16 %v1386, %v1383
        %v1407 = vpack.c.bf16 %v1394, %v1391
        %v1408 = vpack.c.bf16 %v1402, %v1399
        %v1409 = vld [vmem:[#allocation3] sm:$0xff]
        %v1410 = vld [vmem:[#allocation3 + $0x8] sm:$0xff]
        %v1411 = vld [vmem:[#allocation3 + $0x10] sm:$0xff]
        %v1412 = vld [vmem:[#allocation3 + $0x18] sm:$0xff]
        %v1413 = vld [vmem:[#allocation3 + $0x20] sm:$0xff]
        %v1414 = vld [vmem:[#allocation3 + $0x28] sm:$0xff]
        %v1415 = vld [vmem:[#allocation3 + $0x30] sm:$0xff]
        %v1416 = vld [vmem:[#allocation3 + $0x38] sm:$0xff]
        %v1417 = vld [vmem:[#allocation3 + $0x40] sm:$0xff]
        %v1418 = vld [vmem:[#allocation3 + $0x48] sm:$0xff]
        %v1419 = vld [vmem:[#allocation3 + $0x50] sm:$0xff]
        %v1420 = vld [vmem:[#allocation3 + $0x58] sm:$0xff]
        %v1421 = vld [vmem:[#allocation3 + $0x60] sm:$0xff]
        %v1422 = vld [vmem:[#allocation3 + $0x68] sm:$0xff]
        %v1423 = vld [vmem:[#allocation3 + $0x70] sm:$0xff]
        %v1424 = vld [vmem:[#allocation3 + $0x78] sm:$0xff]
        %v1426 = vsel %vm1327, %v1409, 0
        %v1429 = vsel %vm1327, %v1410, 0
        %v1432 = vsel %vm1327, %v1411, 0
        %v1435 = vsel %vm1327, %v1412, 0
        %v1438 = vsel %vm1327, %v1413, 0
        %v1441 = vsel %vm1327, %v1414, 0
        %v1444 = vsel %vm1327, %v1415, 0
        %v1447 = vsel %vm1327, %v1416, 0
        %v1450 = vsel %vm1327, %v1417, 0
        %v1453 = vsel %vm1327, %v1418, 0
        %v1456 = vsel %vm1327, %v1419, 0
        %v1459 = vsel %vm1327, %v1420, 0
        %v1462 = vsel %vm1327, %v1421, 0
        %v1465 = vsel %vm1327, %v1422, 0
        %v1468 = vsel %vm1327, %v1423, 0
        %v1471 = vsel %vm1327, %v1424, 0
        %1473 = vmatprep.subr.bf16.mxu0 0
        %1474 = vmatpush1.bf16.msra.mxu0 %v1405
        %1475 = vmatprep.subr.bf16.mxu0 0
        %1476 = vmatpush1.bf16.msra.mxu0 %v1406
        %1477 = vmatprep.subr.bf16.mxu0 0
        %1478 = vmatpush1.bf16.msra.mxu0 %v1407
        %1479 = vmatprep.subr.bf16.mxu0 0
        %1480 = vmatpush1.bf16.msra.mxu0 %v1408
        %1481 = vmatprep.subr.bf16.mxu0 0
        %1482 = vmatpush1.bf16.msra.mxu0 0
        %1483 = vmatprep.subr.bf16.mxu0 0
        %1484 = vmatpush1.bf16.msra.mxu0 0
        %1485 = vmatprep.subr.bf16.mxu0 0
        %1486 = vmatpush1.bf16.msra.mxu0 0
        %1487 = vmatprep.subr.bf16.mxu0 0
        %1488 = vmatpush1.bf16.msra.mxu0 0
        %1489 = vmatprep.subr.bf16.mxu0 0
        %1490 = vmatpush1.bf16.msra.mxu0 0
        %1491 = vmatprep.subr.bf16.mxu0 0
        %1492 = vmatpush1.bf16.msra.mxu0 0
        %1493 = vmatprep.subr.bf16.mxu0 0
        %1494 = vmatpush1.bf16.msra.mxu0 0
        %1495 = vmatprep.subr.bf16.mxu0 0
        %1496 = vmatpush1.bf16.msra.mxu0 0
        %1497 = vmatprep.subr.bf16.mxu0 0
        %1498 = vmatpush1.bf16.msra.mxu0 0
        %1499 = vmatprep.subr.bf16.mxu0 0
        %1500 = vmatpush1.bf16.msra.mxu0 0
        %1501 = vmatprep.subr.bf16.mxu0 0
        %1502 = vmatpush1.bf16.msra.mxu0 0
        %1503 = vmatprep.subr.bf16.mxu0 0
        %1504 = vmatpush1.bf16.msra.mxu0 0
        %1505 = vmatprep.mubr.bf16.mxu0 0
        %1506 = vmatmul.mubr.bf16.gmra.mrb[0].mxu0 %v1426
        %v1507 = vpop.f32.mrb[0].mxu0
        %v1508 = vadd.f32 0.0, %v1507
        %v1509 = vpop.f32.mrb[0].mxu0
        %v1510 = vpop.f32.mrb[0].mxu0
        %v1511 = vadd.f32 0.0, %v1510
        %v1512 = vpop.f32.mrb[0].mxu0
        %1513 = vmatprep.mubr.bf16.mxu0 0
        %1514 = vmatmul.mubr.bf16.gmra.mrb[0].mxu0 %v1429
        %v1515 = vpop.f32.mrb[0].mxu0
        %v1516 = vadd.f32 0.0, %v1515
        %v1517 = vpop.f32.mrb[0].mxu0
        %v1518 = vpop.f32.mrb[0].mxu0
        %v1519 = vadd.f32 0.0, %v1518
        %v1520 = vpop.f32.mrb[0].mxu0
        %1521 = vmatprep.mubr.bf16.mxu0 0
        %1522 = vmatmul.mubr.bf16.gmra.mrb[0].mxu0 %v1432
        %v1523 = vpop.f32.mrb[0].mxu0
        %v1524 = vadd.f32 0.0, %v1523
        %v1525 = vpop.f32.mrb[0].mxu0
        %v1526 = vpop.f32.mrb[0].mxu0
        %v1527 = vadd.f32 0.0, %v1526
        %v1528 = vpop.f32.mrb[0].mxu0
        %1529 = vmatprep.mubr.bf16.mxu0 0
        %1530 = vmatmul.mubr.bf16.gmra.mrb[0].mxu0 %v1435
        %v1531 = vpop.f32.mrb[0].mxu0
        %v1532 = vadd.f32 0.0, %v1531
        %v1533 = vpop.f32.mrb[0].mxu0
        %v1534 = vpop.f32.mrb[0].mxu0
        %v1535 = vadd.f32 0.0, %v1534
        %v1536 = vpop.f32.mrb[0].mxu0
        %1537 = vmatprep.mubr.bf16.mxu0 0
        %1538 = vmatmul.mubr.bf16.gmra.mrb[0].mxu0 %v1438
        %v1539 = vpop.f32.mrb[0].mxu0
        %v1540 = vadd.f32 0.0, %v1539
        %v1541 = vpop.f32.mrb[0].mxu0
        %v1542 = vpop.f32.mrb[0].mxu0
        %v1543 = vadd.f32 0.0, %v1542
        %v1544 = vpop.f32.mrb[0].mxu0
        %1545 = vmatprep.mubr.bf16.mxu0 0
        %1546 = vmatmul.mubr.bf16.gmra.mrb[0].mxu0 %v1441
        %v1547 = vpop.f32.mrb[0].mxu0
        %v1548 = vadd.f32 0.0, %v1547
        %v1549 = vpop.f32.mrb[0].mxu0
        %v1550 = vpop.f32.mrb[0].mxu0
        %v1551 = vadd.f32 0.0, %v1550
        %v1552 = vpop.f32.mrb[0].mxu0
        %1553 = vmatprep.mubr.bf16.mxu0 0
        %1554 = vmatmul.mubr.bf16.gmra.mrb[0].mxu0 %v1444
        %v1555 = vpop.f32.mrb[0].mxu0
        %v1556 = vadd.f32 0.0, %v1555
        %v1557 = vpop.f32.mrb[0].mxu0
        %v1558 = vpop.f32.mrb[0].mxu0
        %v1559 = vadd.f32 0.0, %v1558
        %v1560 = vpop.f32.mrb[0].mxu0
        %1561 = vmatprep.mubr.bf16.mxu0 0
        %1562 = vmatmul.mubr.bf16.gmra.mrb[0].mxu0 %v1447
        %v1563 = vpop.f32.mrb[0].mxu0
        %v1564 = vadd.f32 0.0, %v1563
        %v1565 = vpop.f32.mrb[0].mxu0
        %v1566 = vpop.f32.mrb[0].mxu0
        %v1567 = vadd.f32 0.0, %v1566
        %v1568 = vpop.f32.mrb[0].mxu0
        %1569 = vmatprep.mubr.bf16.mxu0 0
        %1570 = vmatmul.mubr.bf16.gmra.mrb[0].mxu0 %v1450
        %v1571 = vpop.f32.mrb[0].mxu0
        %v1572 = vadd.f32 0.0, %v1571
        %v1573 = vpop.f32.mrb[0].mxu0
        %v1574 = vpop.f32.mrb[0].mxu0
        %v1575 = vadd.f32 0.0, %v1574
        %v1576 = vpop.f32.mrb[0].mxu0
        %1577 = vmatprep.mubr.bf16.mxu0 0
        %1578 = vmatmul.mubr.bf16.gmra.mrb[0].mxu0 %v1453
        %v1579 = vpop.f32.mrb[0].mxu0
        %v1580 = vadd.f32 0.0, %v1579
        %v1581 = vpop.f32.mrb[0].mxu0
        %v1582 = vpop.f32.mrb[0].mxu0
        %v1583 = vadd.f32 0.0, %v1582
        %v1584 = vpop.f32.mrb[0].mxu0
        %1585 = vmatprep.mubr.bf16.mxu0 0
        %1586 = vmatmul.mubr.bf16.gmra.mrb[0].mxu0 %v1456
        %v1587 = vpop.f32.mrb[0].mxu0
        %v1588 = vadd.f32 0.0, %v1587
        %v1589 = vpop.f32.mrb[0].mxu0
        %v1590 = vpop.f32.mrb[0].mxu0
        %v1591 = vadd.f32 0.0, %v1590
        %v1592 = vpop.f32.mrb[0].mxu0
        %1593 = vmatprep.mubr.bf16.mxu0 0
        %1594 = vmatmul.mubr.bf16.gmra.mrb[0].mxu0 %v1459
        %v1595 = vpop.f32.mrb[0].mxu0
        %v1596 = vadd.f32 0.0, %v1595
        %v1597 = vpop.f32.mrb[0].mxu0
        %v1598 = vpop.f32.mrb[0].mxu0
        %v1599 = vadd.f32 0.0, %v1598
        %v1600 = vpop.f32.mrb[0].mxu0
        %1601 = vmatprep.mubr.bf16.mxu0 0
        %1602 = vmatmul.mubr.bf16.gmra.mrb[0].mxu0 %v1462
        %v1603 = vpop.f32.mrb[0].mxu0
        %v1604 = vadd.f32 0.0, %v1603
        %v1605 = vpop.f32.mrb[0].mxu0
        %v1606 = vpop.f32.mrb[0].mxu0
        %v1607 = vadd.f32 0.0, %v1606
        %v1608 = vpop.f32.mrb[0].mxu0
        %1609 = vmatprep.mubr.bf16.mxu0 0
        %1610 = vmatmul.mubr.bf16.gmra.mrb[0].mxu0 %v1465
        %v1611 = vpop.f32.mrb[0].mxu0
        %v1612 = vadd.f32 0.0, %v1611
        %v1613 = vpop.f32.mrb[0].mxu0
        %v1614 = vpop.f32.mrb[0].mxu0
        %v1615 = vadd.f32 0.0, %v1614
        %v1616 = vpop.f32.mrb[0].mxu0
        %1617 = vmatprep.mubr.bf16.mxu0 0
        %1618 = vmatmul.mubr.bf16.gmra.mrb[0].mxu0 %v1468
        %v1619 = vpop.f32.mrb[0].mxu0
        %v1620 = vadd.f32 0.0, %v1619
        %v1621 = vpop.f32.mrb[0].mxu0
        %v1622 = vpop.f32.mrb[0].mxu0
        %v1623 = vadd.f32 0.0, %v1622
        %v1624 = vpop.f32.mrb[0].mxu0
        %1625 = vmatprep.mubr.bf16.mxu0 0
        %1626 = vmatmul.mubr.bf16.gmra.mrb[0].mxu0 %v1471
        %v1627 = vpop.f32.mrb[0].mxu0
        %v1628 = vadd.f32 0.0, %v1627
        %v1629 = vpop.f32.mrb[0].mxu0
        %v1630 = vpop.f32.mrb[0].mxu0
        %v1631 = vadd.f32 0.0, %v1630
        %v1632 = vpop.f32.mrb[0].mxu0
        %1633 = vdwg.mxu0
        %v1634 = vmax.f32 %v1508, %v1524
        %v1635 = vmax.f32 %v1511, %v1527
        %v1636 = vmax.f32 %v1516, %v1532
        %v1637 = vmax.f32 %v1519, %v1535
        %v1638 = vmax.f32 %v1634, %v1540
        %v1639 = vmax.f32 %v1635, %v1543
        %v1640 = vmax.f32 %v1636, %v1548
        %v1641 = vmax.f32 %v1637, %v1551
        %v1642 = vmax.f32 %v1638, %v1556
        %v1643 = vmax.f32 %v1639, %v1559
        %v1644 = vmax.f32 %v1640, %v1564
        %v1645 = vmax.f32 %v1641, %v1567
        %v1646 = vmax.f32 %v1642, %v1572
        %v1647 = vmax.f32 %v1643, %v1575
        %v1648 = vmax.f32 %v1644, %v1580
        %v1649 = vmax.f32 %v1645, %v1583
        %v1650 = vmax.f32 %v1646, %v1588
        %v1651 = vmax.f32 %v1647, %v1591
        %v1652 = vmax.f32 %v1648, %v1596
        %v1653 = vmax.f32 %v1649, %v1599
        %v1654 = vmax.f32 %v1650, %v1604
        %v1655 = vmax.f32 %v1651, %v1607
        %v1656 = vmax.f32 %v1652, %v1612
        %v1657 = vmax.f32 %v1653, %v1615
        %v1658 = vmax.f32 %v1654, %v1620
        %v1659 = vmax.f32 %v1655, %v1623
        %v1660 = vmax.f32 %v1656, %v1628
        %v1661 = vmax.f32 %v1657, %v1631
        %v1662 = vmax.f32 %v1658, %v1659
        %v1663 = vmax.f32 %v1660, %v1661
        %v1664 = vmax.f32 %v1662, %v1663
        %v1665 = vrot.slane %v1664, 4
        %v1666 = vmax.f32 %v1664, %v1665
        %v1667 = vrot.slane %v1666, 2
        %v1668 = vmax.f32 %v1666, %v1667
        %v1669 = vrot.slane %v1668, 1
        %v1670 = vmax.f32 %v1668, %v1669
        %v1671 = vsub.f32 %v1508, %v1670
        %v1672 = vsub.f32 %v1511, %v1670
        %v1673 = vsub.f32 %v1516, %v1670
        %v1674 = vsub.f32 %v1519, %v1670
        %v1675 = vsub.f32 %v1524, %v1670
        %v1676 = vsub.f32 %v1527, %v1670
        %v1677 = vsub.f32 %v1532, %v1670
        %v1678 = vsub.f32 %v1535, %v1670
        %v1679 = vsub.f32 %v1540, %v1670
        %v1680 = vsub.f32 %v1543, %v1670
        %v1681 = vsub.f32 %v1548, %v1670
        %v1682 = vsub.f32 %v1551, %v1670
        %v1683 = vsub.f32 %v1556, %v1670
        %v1684 = vsub.f32 %v1559, %v1670
        %v1685 = vsub.f32 %v1564, %v1670
        %v1686 = vsub.f32 %v1567, %v1670
        %v1687 = vsub.f32 %v1572, %v1670
        %v1688 = vsub.f32 %v1575, %v1670
        %v1689 = vsub.f32 %v1580, %v1670
        %v1690 = vsub.f32 %v1583, %v1670
        %v1691 = vsub.f32 %v1588, %v1670
        %v1692 = vsub.f32 %v1591, %v1670
        %v1693 = vsub.f32 %v1596, %v1670
        %v1694 = vsub.f32 %v1599, %v1670
        %v1695 = vsub.f32 %v1604, %v1670
        %v1696 = vsub.f32 %v1607, %v1670
        %v1697 = vsub.f32 %v1612, %v1670
        %v1698 = vsub.f32 %v1615, %v1670
        %v1699 = vsub.f32 %v1620, %v1670
        %v1700 = vsub.f32 %v1623, %v1670
        %v1701 = vsub.f32 %v1628, %v1670
        %v1702 = vsub.f32 %v1631, %v1670
        %v1703 = vmul.f32 %v1671, 1.442695
        %v1704 = vpow.pop %v1703
        %v1705 = vmul.f32 %v1672, 1.442695
        %v1706 = vpow.pop %v1705
        %v1707 = vmul.f32 %v1673, 1.442695
        %v1708 = vpow.pop %v1707
        %v1709 = vmul.f32 %v1674, 1.442695
        %v1710 = vpow.pop %v1709
        %v1711 = vmul.f32 %v1675, 1.442695
        %v1712 = vpow.pop %v1711
        %v1713 = vmul.f32 %v1676, 1.442695
        %v1714 = vpow.pop %v1713
        %v1715 = vmul.f32 %v1677, 1.442695
        %v1716 = vpow.pop %v1715
        %v1717 = vmul.f32 %v1678, 1.442695
        %v1718 = vpow.pop %v1717
        %v1719 = vmul.f32 %v1679, 1.442695
        %v1720 = vpow.pop %v1719
        %v1721 = vmul.f32 %v1680, 1.442695
        %v1722 = vpow.pop %v1721
        %v1723 = vmul.f32 %v1681, 1.442695
        %v1724 = vpow.pop %v1723
        %v1725 = vmul.f32 %v1682, 1.442695
        %v1726 = vpow.pop %v1725
        %v1727 = vmul.f32 %v1683, 1.442695
        %v1728 = vpow.pop %v1727
        %v1729 = vmul.f32 %v1684, 1.442695
        %v1730 = vpow.pop %v1729
        %v1731 = vmul.f32 %v1685, 1.442695
        %v1732 = vpow.pop %v1731
        %v1733 = vmul.f32 %v1686, 1.442695
        %v1734 = vpow.pop %v1733
        %v1735 = vmul.f32 %v1687, 1.442695
        %v1736 = vpow.pop %v1735
        %v1737 = vmul.f32 %v1688, 1.442695
        %v1738 = vpow.pop %v1737
        %v1739 = vmul.f32 %v1689, 1.442695
        %v1740 = vpow.pop %v1739
        %v1741 = vmul.f32 %v1690, 1.442695
        %v1742 = vpow.pop %v1741
        %v1743 = vmul.f32 %v1691, 1.442695
        %v1744 = vpow.pop %v1743
        %v1745 = vmul.f32 %v1692, 1.442695
        %v1746 = vpow.pop %v1745
        %v1747 = vmul.f32 %v1693, 1.442695
        %v1748 = vpow.pop %v1747
        %v1749 = vmul.f32 %v1694, 1.442695
        %v1750 = vpow.pop %v1749
        %v1751 = vmul.f32 %v1695, 1.442695
        %v1752 = vpow.pop %v1751
        %v1753 = vmul.f32 %v1696, 1.442695
        %v1754 = vpow.pop %v1753
        %v1755 = vmul.f32 %v1697, 1.442695
        %v1756 = vpow.pop %v1755
        %v1757 = vmul.f32 %v1698, 1.442695
        %v1758 = vpow.pop %v1757
        %v1759 = vmul.f32 %v1699, 1.442695
        %v1760 = vpow.pop %v1759
        %v1761 = vmul.f32 %v1700, 1.442695
        %v1762 = vpow.pop %v1761
        %v1763 = vmul.f32 %v1701, 1.442695
        %v1764 = vpow.pop %v1763
        %v1765 = vmul.f32 %v1702, 1.442695
        %v1766 = vpow.pop %v1765
        %v1767 = vadd.f32 %v1704, %v1706
        %v1768 = vadd.f32 %v1767, %v1708
        %v1769 = vadd.f32 %v1768, %v1710
        %v1770 = vadd.f32 %v1769, %v1712
        %v1771 = vadd.f32 %v1770, %v1714
        %v1772 = vadd.f32 %v1771, %v1716
        %v1773 = vadd.f32 %v1772, %v1718
        %v1774 = vadd.f32 %v1773, %v1720
        %v1775 = vadd.f32 %v1774, %v1722
        %v1776 = vadd.f32 %v1775, %v1724
        %v1777 = vadd.f32 %v1776, %v1726
        %v1778 = vadd.f32 %v1777, %v1728
        %v1779 = vadd.f32 %v1778, %v1730
        %v1780 = vadd.f32 %v1779, %v1732
        %v1781 = vadd.f32 %v1780, %v1734
        %v1782 = vadd.f32 %v1781, %v1736
        %v1783 = vadd.f32 %v1782, %v1738
        %v1784 = vadd.f32 %v1783, %v1740
        %v1785 = vadd.f32 %v1784, %v1742
        %v1786 = vadd.f32 %v1785, %v1744
        %v1787 = vadd.f32 %v1786, %v1746
        %v1788 = vadd.f32 %v1787, %v1748
        %v1789 = vadd.f32 %v1788, %v1750
        %v1790 = vadd.f32 %v1789, %v1752
        %v1791 = vadd.f32 %v1790, %v1754
        %v1792 = vadd.f32 %v1791, %v1756
        %v1793 = vadd.f32 %v1792, %v1758
        %v1794 = vadd.f32 %v1793, %v1760
        %v1795 = vadd.f32 %v1794, %v1762
        %v1796 = vadd.f32 %v1795, %v1764
        %v1797 = vadd.f32 %v1796, %v1766
        %v1798 = vrot.slane %v1797, 4
        %v1799 = vadd.f32 %v1797, %v1798
        %v1800 = vrot.slane %v1799, 2
        %v1801 = vadd.f32 %v1799, %v1800
        %v1802 = vrot.slane %v1801, 1
        %v1803 = vadd.f32 %v1801, %v1802
        %v1804 = vrcp.pop %v1803
        %v1805 = vld [vmem:[#allocation4] sm:$0xff]
        %v1806 = vld [vmem:[#allocation4 + $0x8] sm:$0xff]
        %v1807 = vld [vmem:[#allocation4 + $0x10] sm:$0xff]
        %v1808 = vld [vmem:[#allocation4 + $0x18] sm:$0xff]
        %v1809 = vld [vmem:[#allocation4 + $0x20] sm:$0xff]
        %v1810 = vld [vmem:[#allocation4 + $0x28] sm:$0xff]
        %v1811 = vld [vmem:[#allocation4 + $0x30] sm:$0xff]
        %v1812 = vld [vmem:[#allocation4 + $0x38] sm:$0xff]
        %v1813 = vpack.c.bf16 %v1706, %v1704
        %v1814 = vpack.c.bf16 %v1710, %v1708
        %v1815 = vpack.c.bf16 %v1714, %v1712
        %v1816 = vpack.c.bf16 %v1718, %v1716
        %v1817 = vpack.c.bf16 %v1722, %v1720
        %v1818 = vpack.c.bf16 %v1726, %v1724
        %v1819 = vpack.c.bf16 %v1730, %v1728
        %v1820 = vpack.c.bf16 %v1734, %v1732
        %v1821 = vpack.c.bf16 %v1738, %v1736
        %v1822 = vpack.c.bf16 %v1742, %v1740
        %v1823 = vpack.c.bf16 %v1746, %v1744
        %v1824 = vpack.c.bf16 %v1750, %v1748
        %v1825 = vpack.c.bf16 %v1754, %v1752
        %v1826 = vpack.c.bf16 %v1758, %v1756
        %v1827 = vpack.c.bf16 %v1762, %v1760
        %v1828 = vpack.c.bf16 %v1766, %v1764
        %1829 = vmatprep.subr.bf16.mxu0 0
        %1830 = vmatpush1.bf16.msra.mxu0 %v1813
        %1831 = vmatprep.subr.bf16.mxu0 0
        %1832 = vmatpush1.bf16.msra.mxu0 %v1814
        %1833 = vmatprep.subr.bf16.mxu0 0
        %1834 = vmatpush1.bf16.msra.mxu0 %v1815
        %1835 = vmatprep.subr.bf16.mxu0 0
        %1836 = vmatpush1.bf16.msra.mxu0 %v1816
        %1837 = vmatprep.subr.bf16.mxu0 0
        %1838 = vmatpush1.bf16.msra.mxu0 %v1817
        %1839 = vmatprep.subr.bf16.mxu0 0
        %1840 = vmatpush1.bf16.msra.mxu0 %v1818
        %1841 = vmatprep.subr.bf16.mxu0 0
        %1842 = vmatpush1.bf16.msra.mxu0 %v1819
        %1843 = vmatprep.subr.bf16.mxu0 0
        %1844 = vmatpush1.bf16.msra.mxu0 %v1820
        %1845 = vmatprep.subr.bf16.mxu0 0
        %1846 = vmatpush1.bf16.msra.mxu0 %v1821
        %1847 = vmatprep.subr.bf16.mxu0 0
        %1848 = vmatpush1.bf16.msra.mxu0 %v1822
        %1849 = vmatprep.subr.bf16.mxu0 0
        %1850 = vmatpush1.bf16.msra.mxu0 %v1823
        %1851 = vmatprep.subr.bf16.mxu0 0
        %1852 = vmatpush1.bf16.msra.mxu0 %v1824
        %1853 = vmatprep.subr.bf16.mxu0 0
        %1854 = vmatpush1.bf16.msra.mxu0 %v1825
        %1855 = vmatprep.subr.bf16.mxu0 0
        %1856 = vmatpush1.bf16.msra.mxu0 %v1826
        %1857 = vmatprep.subr.bf16.mxu0 0
        %1858 = vmatpush1.bf16.msra.mxu0 %v1827
        %1859 = vmatprep.subr.bf16.mxu0 0
        %1860 = vmatpush1.bf16.msra.mxu0 %v1828
        %1861 = vmatprep.mubr.bf16.mxu0 %v1806
        %1862 = vmatmul.mubr.bf16.gmra.mrb[0].mxu0 %v1805
        %v1863 = vpop.f32.mrb[0].mxu0
        %v1864 = vadd.f32 0.0, %v1863
        %v1865 = vpop.f32.mrb[0].mxu0
        %v1866 = vpop.f32.mrb[0].mxu0
        %v1867 = vadd.f32 0.0, %v1866
        %v1868 = vpop.f32.mrb[0].mxu0
        %1869 = vmatprep.mubr.bf16.mxu0 %v1808
        %1870 = vmatmul.mubr.bf16.gmra.mrb[0].mxu0 %v1807
        %v1871 = vpop.f32.mrb[0].mxu0
        %v1872 = vadd.f32 0.0, %v1871
        %v1873 = vpop.f32.mrb[0].mxu0
        %v1874 = vpop.f32.mrb[0].mxu0
        %v1875 = vadd.f32 0.0, %v1874
        %v1876 = vpop.f32.mrb[0].mxu0
        %1877 = vmatprep.mubr.bf16.mxu0 %v1810
        %1878 = vmatmul.mubr.bf16.gmra.mrb[0].mxu0 %v1809
        %v1879 = vpop.f32.mrb[0].mxu0
        %v1880 = vadd.f32 0.0, %v1879
        %v1881 = vpop.f32.mrb[0].mxu0
        %v1882 = vpop.f32.mrb[0].mxu0
        %v1883 = vadd.f32 0.0, %v1882
        %v1884 = vpop.f32.mrb[0].mxu0
        %1885 = vmatprep.mubr.bf16.mxu0 %v1812
        %1886 = vmatmul.mubr.bf16.gmra.mrb[0].mxu0 %v1811
        %v1887 = vpop.f32.mrb[0].mxu0
        %v1888 = vadd.f32 0.0, %v1887
        %v1889 = vpop.f32.mrb[0].mxu0
        %v1890 = vpop.f32.mrb[0].mxu0
        %v1891 = vadd.f32 0.0, %v1890
        %v1892 = vpop.f32.mrb[0].mxu0
        %1893 = vdwg.mxu0
        %v1894 = vmul.f32 %v1864, %v1804
        %v1895 = vmul.f32 %v1867, %v1804
        %v1896 = vmul.f32 %v1872, %v1804
        %v1897 = vmul.f32 %v1875, %v1804
        %v1898 = vmul.f32 %v1880, %v1804
        %v1899 = vmul.f32 %v1883, %v1804
        %v1900 = vmul.f32 %v1888, %v1804
        %v1901 = vmul.f32 %v1891, %v1804
        %v1902 = vpack.c.bf16 %v1895, %v1894
        %v1903 = vpack.c.bf16 %v1897, %v1896
        %v1904 = vpack.c.bf16 %v1899, %v1898
        %v1905 = vpack.c.bf16 %v1901, %v1900
        %v1906 = vld [vmem:[%s9] sm:$0xf]
        %v1907 = vld [vmem:[%s9 + $0x4] sm:$0xf]
        %v1908 = vld [vmem:[%s9 + $0x8] sm:$0xf]
        %v1909 = vld [vmem:[%s9 + $0xc] sm:$0xf]
        %v1910 = vld [vmem:[%s9 + $0x10] sm:$0xf]
        %v1911 = vld [vmem:[%s9 + $0x14] sm:$0xf]
        %v1912 = vld [vmem:[%s9 + $0x18] sm:$0xf]
        %v1913 = vld [vmem:[%s9 + $0x1c] sm:$0xf]
        %v1914 = vld [vmem:[%s10] sm:$0xff]
        %v1915 = vld [vmem:[%s10 + $0x8] sm:$0xff]
        %v1916 = vld [vmem:[%s10 + $0x10] sm:$0xff]
        %v1917 = vld [vmem:[%s10 + $0x18] sm:$0xff]
        %v1918 = vld [vmem:[%s10 + $0x20] sm:$0xff]
        %v1919 = vld [vmem:[%s10 + $0x28] sm:$0xff]
        %v1920 = vld [vmem:[%s10 + $0x30] sm:$0xff]
        %v1921 = vld [vmem:[%s10 + $0x38] sm:$0xff]
        %1923 = vset.pattern.permute.xlu0 0
        %1924 = vperm.xlu0 %1923, %v1914
        %v1925 = vpop.permute.xlu0 %1924
        %1928 = vset.pattern.permute.xlu0 0
        %1929 = vperm.xlu0 %1928, %v1915
        %v1930 = vpop.permute.xlu0 %1929
        %1933 = vset.pattern.permute.xlu0 0
        %1934 = vperm.xlu0 %1933, %v1916
        %v1935 = vpop.permute.xlu0 %1934
        %1938 = vset.pattern.permute.xlu0 0
        %1939 = vperm.xlu0 %1938, %v1917
        %v1940 = vpop.permute.xlu0 %1939
        %1943 = vset.pattern.permute.xlu0 0
        %1944 = vperm.xlu0 %1943, %v1918
        %v1945 = vpop.permute.xlu0 %1944
        %1948 = vset.pattern.permute.xlu0 0
        %1949 = vperm.xlu0 %1948, %v1919
        %v1950 = vpop.permute.xlu0 %1949
        %1953 = vset.pattern.permute.xlu0 0
        %1954 = vperm.xlu0 %1953, %v1920
        %v1955 = vpop.permute.xlu0 %1954
        %1958 = vset.pattern.permute.xlu0 0
        %1959 = vperm.xlu0 %1958, %v1921
        %v1960 = vpop.permute.xlu0 %1959
        %v1970 = vunpack.c.l.b16 %v1906
        %v1971 = vunpack.c.l.b16 %v1907
        %v1972 = vunpack.c.l.b16 %v1908
        %v1973 = vunpack.c.l.b16 %v1909
        %v1974 = vunpack.c.l.b16 %v1910
        %v1975 = vunpack.c.l.b16 %v1911
        %v1976 = vunpack.c.l.b16 %v1912
        %v1977 = vunpack.c.l.b16 %v1913
        %v1978 = vpack.c.b16 %v1971, %v1970
        %v1979 = vpack.c.b16 %v1973, %v1972
        %v1980 = vpack.c.b16 %v1975, %v1974
        %v1981 = vpack.c.b16 %v1977, %v1976
        %v1983 = vsel %vm1327, %v1978, 0
        %v1986 = vsel %vm1327, %v1979, 0
        %v1989 = vsel %vm1327, %v1980, 0
        %v1992 = vsel %vm1327, %v1981, 0
        %1994 = vmatprep.subr.bf16.mxu0 0
        %1995 = vmatpush1.bf16.msra.mxu0 %v1902
        %1996 = vmatprep.subr.bf16.mxu0 0
        %1997 = vmatpush1.bf16.msra.mxu0 %v1903
        %1998 = vmatprep.subr.bf16.mxu0 0
        %1999 = vmatpush1.bf16.msra.mxu0 %v1904
        %2000 = vmatprep.subr.bf16.mxu0 0
        %2001 = vmatpush1.bf16.msra.mxu0 %v1905
        %2002 = vmatprep.subr.bf16.mxu0 0
        %2003 = vmatpush1.bf16.msra.mxu0 0
        %2004 = vmatprep.subr.bf16.mxu0 0
        %2005 = vmatpush1.bf16.msra.mxu0 0
        %2006 = vmatprep.subr.bf16.mxu0 0
        %2007 = vmatpush1.bf16.msra.mxu0 0
        %2008 = vmatprep.subr.bf16.mxu0 0
        %2009 = vmatpush1.bf16.msra.mxu0 0
        %2010 = vmatprep.subr.bf16.mxu0 0
        %2011 = vmatpush1.bf16.msra.mxu0 0
        %2012 = vmatprep.subr.bf16.mxu0 0
        %2013 = vmatpush1.bf16.msra.mxu0 0
        %2014 = vmatprep.subr.bf16.mxu0 0
        %2015 = vmatpush1.bf16.msra.mxu0 0
        %2016 = vmatprep.subr.bf16.mxu0 0
        %2017 = vmatpush1.bf16.msra.mxu0 0
        %2018 = vmatprep.subr.bf16.mxu0 0
        %2019 = vmatpush1.bf16.msra.mxu0 0
        %2020 = vmatprep.subr.bf16.mxu0 0
        %2021 = vmatpush1.bf16.msra.mxu0 0
        %2022 = vmatprep.subr.bf16.mxu0 0
        %2023 = vmatpush1.bf16.msra.mxu0 0
        %2024 = vmatprep.subr.bf16.mxu0 0
        %2025 = vmatpush1.bf16.msra.mxu0 0
        %2026 = vmatprep.mubr.bf16.mxu0 0
        %2027 = vmatmul.mubr.bf16.gmra.mrb[0].mxu0 %v1983
        %v2028 = vpop.f32.mrb[0].mxu0
        %v2029 = vadd.f32 %v1925, %v2028
        %v2030 = vpop.f32.mrb[0].mxu0
        %v2031 = vpop.f32.mrb[0].mxu0
        %v2032 = vadd.f32 %v1930, %v2031
        %v2033 = vpop.f32.mrb[0].mxu0
        %2034 = vmatprep.mubr.bf16.mxu0 0
        %2035 = vmatmul.mubr.bf16.gmra.mrb[0].mxu0 %v1986
        %v2036 = vpop.f32.mrb[0].mxu0
        %v2037 = vadd.f32 %v1935, %v2036
        %v2038 = vpop.f32.mrb[0].mxu0
        %v2039 = vpop.f32.mrb[0].mxu0
        %v2040 = vadd.f32 %v1940, %v2039
        %v2041 = vpop.f32.mrb[0].mxu0
        %2042 = vmatprep.mubr.bf16.mxu0 0
        %2043 = vmatmul.mubr.bf16.gmra.mrb[0].mxu0 %v1989
        %v2044 = vpop.f32.mrb[0].mxu0
        %v2045 = vadd.f32 %v1945, %v2044
        %v2046 = vpop.f32.mrb[0].mxu0
        %v2047 = vpop.f32.mrb[0].mxu0
        %v2048 = vadd.f32 %v1950, %v2047
        %v2049 = vpop.f32.mrb[0].mxu0
        %2050 = vmatprep.mubr.bf16.mxu0 0
        %2051 = vmatmul.mubr.bf16.gmra.mrb[0].mxu0 %v1992
        %v2052 = vpop.f32.mrb[0].mxu0
        %v2053 = vadd.f32 %v1955, %v2052
        %v2054 = vpop.f32.mrb[0].mxu0
        %v2055 = vpop.f32.mrb[0].mxu0
        %v2056 = vadd.f32 %v1960, %v2055
        %v2057 = vpop.f32.mrb[0].mxu0
        %2058 = vdwg.mxu0
        %v2059 = vld [vmem:[%s423] sm:$0xff]
        %v2060 = vld [vmem:[%s423 + $0x8] sm:$0xff]
        %v2061 = vld [vmem:[%s423 + $0x10] sm:$0xff]
        %v2062 = vld [vmem:[%s423 + $0x18] sm:$0xff]
        %v2063 = vld [vmem:[%s423 + $0x20] sm:$0xff]
        %v2064 = vld [vmem:[%s423 + $0x28] sm:$0xff]
        %v2065 = vld [vmem:[%s423 + $0x30] sm:$0xff]
        %v2066 = vld [vmem:[%s423 + $0x38] sm:$0xff]
        %v2067 = vadd.f32 %v2059, %v2029
        %v2068 = vadd.f32 %v2060, %v2032
        %v2069 = vadd.f32 %v2061, %v2037
        %v2070 = vadd.f32 %v2062, %v2040
        %v2071 = vadd.f32 %v2063, %v2045
        %v2072 = vadd.f32 %v2064, %v2048
        %v2073 = vadd.f32 %v2065, %v2053
        %v2074 = vadd.f32 %v2066, %v2056
        %2075 = vst [vmem:[%s478] sm:$0xff] %v2067
        %2076 = vst [vmem:[%s478 + $0x8] sm:$0xff] %v2068
        %2077 = vst [vmem:[%s478 + $0x10] sm:$0xff] %v2069
        %2078 = vst [vmem:[%s478 + $0x18] sm:$0xff] %v2070
        %2079 = vst [vmem:[%s478 + $0x20] sm:$0xff] %v2071
        %2080 = vst [vmem:[%s478 + $0x28] sm:$0xff] %v2072
        %2081 = vst [vmem:[%s478 + $0x30] sm:$0xff] %v2073
        %2082 = vst [vmem:[%s478 + $0x38] sm:$0xff] %v2074
        %s2083 = sand.u32 %s295, 1
        %s2084 = scalar_lea.sflag [#allocation7], %s2083
        %s2085 = sand.u32 %s295, 1
        %s2086 = smul.addr %s2085, 64
        %s2087 = scalar_lea.vmem [#allocation13], %s2086
        // Predicated region
        $region85: #{tpu_custom_call.1} parent=63 // pred_check
          %p2088 = pneg %p305
        $region86: #{tpu_custom_call.1} parent=63 // pred_check_branch
          %2090 = sbr.rel (%p2088) target = $region88
        $region87: #{tpu_custom_call.1} parent=63 // pred_region
          %s2092 = ssub.s32 1024, 1024
          %2093 = vsyncadd %s2084, %s2092
          %s2094 = smul.addr %s34, 16
          %s2095 = sadd.s32 %s35, %s2094
          %s2096 = smul.addr %s2095, 128
          %s2097 = scalar_lea.hbm %s11, %s2096
          %s2098 = sshll.u32 %s2087, 4
          %s2099 = int_to_ptr.vmem [resolvable:$true] %s2098
          %2104 = dma.vmem_to_hbm [thread:$0]  %s2099, 1024, %s2097, %s2084, 128, 256, 8
        $region88: #{tpu_custom_call.1} parent=63 // pred_fallthru
          _
      $region64: #{tpu_custom_call.1} parent=5 // pred_fallthru
        _
      %p2105 = scmp.le.s32.totalorder 2, %s25
      // Predicated region
      $region89: #{tpu_custom_call.1} parent=5 // pred_check
        %p2106 = pneg %p2105
      $region90: #{tpu_custom_call.1} parent=5 // pred_check_branch
        %2108 = sbr.rel (%p2106) target = $region92
      $region91: #{tpu_custom_call.1} parent=5 // pred_region
        %s2109 = ssub.s32 %s25, 2
        // Predicated region
        $region93: #{tpu_custom_call.1} parent=91 // pred_check
          %p2110 = pneg %p311
        $region94: #{tpu_custom_call.1} parent=91 // pred_check_branch
          %2112 = sbr.rel (%p2110) target = $region96
        $region95: #{tpu_custom_call.1} parent=91 // pred_region
          %s2113 = sand.u32 %s296, 1
          %s2114 = scalar_lea.sflag [#allocation7], %s2113
          %s2115 = sand.u32 %s296, 1
          %s2116 = smul.addr %s2115, 64
          %s2117 = scalar_lea.vmem [#allocation13], %s2116
          %2118 = dma.done %s2114, 1024
        $region96: #{tpu_custom_call.1} parent=91 // pred_fallthru
          _
      $region92: #{tpu_custom_call.1} parent=5 // pred_fallthru
        _
    $region6: #{tpu_custom_call.1} parent=1 // loop_footer
      %s29 = sadd.s32 1, %s25
    $region7: #{tpu_custom_call.1} parent=1 // loop_footer_branch
      %24 = sbr.rel target = $region3
    $region8: #{tpu_custom_call.1} parent=1 // loop_exit
      _
    %2119 = vsyncpa [#allocation6], 1
    %s2120 = scalar_lea.sflag [#allocation6], 1
    %2121 = vsyncpa %s2120, 1
    %2122 = vsyncpa [#allocation9], 1
    %2123 = vsyncpa [#allocation12], 1
    %2124 = vsyncpa [#allocation7], 1
    %s2125 = scalar_lea.sflag [#allocation7], 1
    %2126 = vsyncpa %s2125, 1

</llo_original>
